<compile_context>
chip_gen: v7x
topology: tpu7x:2x2x1
jax: 0.10.0
libtpu: 0.0.40
codegen_flags: <defaults>
</compile_context>

<pallas_src>
import functools

import jax
import jax.numpy as jnp
import numpy as np
from jax import lax
from jax.experimental import pallas as pl
from jax.experimental.pallas import tpu as pltpu

_LANES = 128
_SEARCH_ITERS = 16  # 4-way search: 4^16 = 2^32 bracket narrowing (f32-exact)


def _smooth_l1(d):
    # Elementwise term of F.smooth_l1_loss (beta=1.0); d = |x - y| >= 0.
    return jnp.where(d < 1.0, 0.5 * d * d, d - 0.5)


def _img_sum(x):
    # (BB, R, 128) -> (BB, 1, 1): sublane accumulation first, then one
    # cross-lane contraction per reduction.
    s = jnp.sum(x, axis=1, keepdims=True)        # (BB, 1, 128)
    return jnp.sum(s, axis=2, keepdims=True)     # (BB, 1, 1)


def _img_max(x):
    m = jnp.max(x, axis=1, keepdims=True)
    return jnp.max(m, axis=2, keepdims=True)


def _centre_line_kernel(yt_ref, yp_ref, out_ref, *, thresh, neg_pos, n_valid, bb):
    # yt_ref / yp_ref: (BB, 3, R, 128) channel-major, sublane+lane dense.
    f32 = jnp.float32
    labels = yt_ref[:, 0, :, :].astype(f32)      # (BB, R, 128)
    logits = yp_ref[:, 0, :, :].astype(f32)

    pos = labels >= thresh                                        # (BB, R, 128)
    num_pos = _img_sum(jnp.where(pos, 1.0, 0.0))                  # (BB, 1, 1)
    # num_neg = clamp(neg_pos * num_pos, max=N-1)   (N = real H*W, padding excluded)
    # NOTE: counts kept in f32 -> exact up to 2^24 pixels per image.
    k = jnp.minimum(jnp.float32(neg_pos) * num_pos, jnp.float32(n_valid - 1))

    diff = jnp.abs(labels - logits)
    sl1_diff = _smooth_l1(diff)
    loss_c = jnp.where(pos, 0.0, diff)            # 0 on positives & padding

    # Positive heat-map term.
    pos_sum = _img_sum(jnp.where(pos, sl1_diff, 0.0))

    # Coordinate regression term (positives only, both coord channels).
    loc_elem = (_smooth_l1(jnp.abs(yt_ref[:, 1, :, :].astype(f32) -
                                   yp_ref[:, 1, :, :].astype(f32))) +
                _smooth_l1(jnp.abs(yt_ref[:, 2, :, :].astype(f32) -
                                   yp_ref[:, 2, :, :].astype(f32))))
    loc_sum = _img_sum(jnp.where(pos, loc_elem, 0.0))

    # Hard-negative mining: k-th largest value of loss_c via 4-way value search.
    # Invariant per image: count(loss_c > lo) >= k > count(loss_c > hi),
    # and cnt_hi == count(loss_c > hi).
    hi0 = _img_max(loss_c)                        # (BB, 1, 1), >= 0
    lo0 = jnp.full_like(hi0, -1.0)
    cnt0 = jnp.zeros_like(hi0)                    # count(> max) == 0

    def body(_, carry):
        lo, hi, cnt_hi = carry
        span = hi - lo
        m1 = lo + 0.25 * span
        m2 = lo + 0.50 * span
        m3 = lo + 0.75 * span
        c1 = _img_sum(jnp.where(loss_c > m1, 1.0, 0.0))
        c2 = _img_sum(jnp.where(loss_c > m2, 1.0, 0.0))
        c3 = _img_sum(jnp.where(loss_c > m3, 1.0, 0.0))
        # new lo = highest boundary whose count >= k
        lo_n = jnp.where(c1 >= k, m1, lo)
        lo_n = jnp.where(c2 >= k, m2, lo_n)
        lo_n = jnp.where(c3 >= k, m3, lo_n)
        # new hi = lowest boundary whose count < k (carry its count)
        hi_n = jnp.where(c3 < k, m3, hi)
        cnt_n = jnp.where(c3 < k, c3, cnt_hi)
        hi_n = jnp.where(c2 < k, m2, hi_n)
        cnt_n = jnp.where(c2 < k, c2, cnt_n)
        hi_n = jnp.where(c1 < k, m1, hi_n)
        cnt_n = jnp.where(c1 < k, c1, cnt_n)
        return lo_n, hi_n, cnt_n

    _, v_k, c_gt = lax.fori_loop(0, _SEARCH_ITERS, body, (lo0, hi0, cnt0),
                                 unroll=True)     # v_k ~= k-th largest per image

    gt = loss_c > v_k
    sum_gt = _img_sum(jnp.where(gt, sl1_diff, 0.0))
    # TODO(synk): if neg_pos*num_pos exceeds the number of non-positive pixels,
    # torch's sort tie-break decides which zero-loss_c pixels become negatives;
    # here the tied elements' contribution is taken as smooth_l1(v_k).
    neg_sum = jnp.where(k > 0.0, sum_gt + (k - c_gt) * _smooth_l1(v_k), 0.0)

    # Pack the per-batch stats into a lane-dense (BB, 128) tile.
    lane = lax.broadcasted_iota(jnp.int32, (bb, _LANES), 1)

    def col(c, v):                                 # v: (BB, 1, 1)
        return jnp.where(lane == c, v[:, 0], 0.0)  # (BB, 128)

    out_ref[0] = (col(0, pos_sum) + col(1, num_pos) + col(2, neg_sum) +
                  col(3, k) + col(4, loc_sum))


def _choose_bb(batch, r_rows, elem_bytes):
    """Images per grid step: amortize step overhead, cap double-buffered VMEM,
    and keep >=2 grid steps so both v7x TensorCores get work."""
    r_pad = ((r_rows + 7) // 8) * 8
    per_img = 2 * 3 * r_pad * _LANES * elem_bytes      # yt + yp, one buffer
    bb_mem = max(1, (16 << 20) // (2 * per_img))        # <=16 MiB double-buffered inputs
    bb_par = max(1, (batch + 1) // 2)                   # grid length >= 2 when batch >= 2
    return int(max(1, min(8, batch, bb_mem, bb_par)))


def _vmem_cap_bytes():
    try:
        return int(pltpu.get_tpu_info().vmem_capacity_bytes)
    except Exception:
        return 64 << 20  # conservative (v7x has 64 MiB / TensorCore)


@functools.partial(jax.jit, static_argnames=("thresh", "neg_pos"))
def centre_line_loss(y_true, y_pred, thresh=0.5, neg_pos=3):
    """Returns (heatmap_loss, location_loss), matching CentreLineLoss.forward."""
    B, H, W, C = y_true.shape
    assert C == 3
    N = H * W
    R = -(-N // _LANES)
    Np = R * _LANES

    # TODO(synk): the NHWC->channel-major transpose of y_true is a full HBM
    # round trip; have the producer emit y_true channel-major to remove it.
    yt = jnp.transpose(y_true, (0, 3, 1, 2)).reshape(B, 3, N)
    yp = y_pred.reshape(B, 3, N)          # already NCHW: reshape only
    if Np != N:
        # Pad with zeros: label=0 (<thresh => not positive), diff=0 => loss_c=0,
        # so padded pixels never contribute to any term.
        pad = ((0, 0), (0, 0), (0, Np - N))
        yt = jnp.pad(yt, pad)
        yp = jnp.pad(yp, pad)

    elem_bytes = max(jnp.dtype(yt.dtype).itemsize, jnp.dtype(yp.dtype).itemsize)
    bb = _choose_bb(B, R, elem_bytes)
    G = -(-B // bb)
    Bp = G * bb
    if Bp != B:
        # Zero-padded images contribute zero to every stat (num_pos=0 => k=0).
        padb = ((0, Bp - B), (0, 0), (0, 0))
        yt = jnp.pad(yt, padb)
        yp = jnp.pad(yp, padb)
    yt = yt.reshape(Bp, 3, R, _LANES)
    yp = yp.reshape(Bp, 3, R, _LANES)

    # VMEM budget: ~1.5x the double-buffered input working set + slack,
    # capped generation-aware (<= ~60% of physical VMEM per core).
    r_pad = ((R + 7) // 8) * 8
    step_bytes = 2 * 2 * bb * 3 * r_pad * _LANES * elem_bytes
    vmem_limit = int(min(max(8 << 20, int(1.5 * step_bytes) + (8 << 20)),
                         int(0.6 * _vmem_cap_bytes())))
    # TODO(synk): very large maps (H*W >~ 512^2 per image) should add an inner
    # R-tile grid axis + two-pass selection to stay inside v7x's 64 MiB VMEM.

    kernel = functools.partial(_centre_line_kernel, thresh=float(thresh),
                               neg_pos=int(neg_pos), n_valid=N, bb=bb)

    stats = pl.pallas_call(
        kernel,
        out_shape=jax.ShapeDtypeStruct((G, bb, _LANES), jnp.float32),
        grid=(G,),
        in_specs=[
            pl.BlockSpec((bb, 3, R, _LANES), lambda b: (b, 0, 0, 0)),
            pl.BlockSpec((bb, 3, R, _LANES), lambda b: (b, 0, 0, 0)),
        ],
        out_specs=pl.BlockSpec((1, bb, _LANES), lambda b: (b, 0, 0)),
        compiler_params=pltpu.CompilerParams(
            dimension_semantics=("parallel",),
            vmem_limit_bytes=vmem_limit),
    )(yt, yp)

    stats = stats.reshape(Bp, _LANES)
    pos_sum = jnp.sum(stats[:, 0])
    pos_cnt = jnp.sum(stats[:, 1])
    neg_sum = jnp.sum(stats[:, 2])
    neg_cnt = jnp.sum(stats[:, 3])
    loc_sum = jnp.sum(stats[:, 4])

    heatmap_loss = neg_pos * (pos_sum / pos_cnt) + neg_sum / neg_cnt
    location_loss = loc_sum / (2.0 * pos_cnt)
    return heatmap_loss, location_loss


def reference_loss(y_true, y_pred, thresh=0.5, neg_pos=3):
    """Pure-JAX transcription of the PyTorch forward (sort-based), for checking."""
    y_pred = jnp.transpose(y_pred, (0, 2, 3, 1))
    labels = y_true[..., 0]
    logits = y_pred[..., 0]
    B, H, W = labels.shape
    N = H * W
    pos = labels >= thresh
    num_pos = jnp.sum(pos.reshape(B, -1), axis=1)
    d = jnp.abs(labels - logits)
    loss_c = jnp.where(pos, 0.0, d).reshape(B, -1)
    loss_idx = jnp.argsort(-loss_c, axis=1)
    idx_rank = jnp.argsort(loss_idx, axis=1)
    num_neg = jnp.minimum(neg_pos * num_pos, N - 1)
    neg = (idx_rank < num_neg[:, None]).reshape(B, H, W)
    sl1 = lambda x: jnp.where(x < 1.0, 0.5 * x * x, x - 0.5)
    heat = (neg_pos * jnp.sum(jnp.where(pos, sl1(d), 0.0)) / jnp.sum(pos)
            + jnp.sum(jnp.where(neg, sl1(d), 0.0)) / jnp.sum(neg))
    cd = jnp.abs(y_true[..., 1:] - y_pred[..., 1:])
    loc = jnp.sum(jnp.where(pos[..., None], sl1(cd), 0.0)) / (2 * jnp.sum(pos))
    return heat, loc


if __name__ == "__main__":
    key = jax.random.PRNGKey(0)
    k1, k2, k3 = jax.random.split(key, 3)
    B, H, W = 2, 16, 16

    # Score channel: sparse positives (~13% above thresh=0.5) so that
    # 3 * num_pos stays below the number of nonzero-loss negatives.
    score = jax.random.uniform(k1, (B, H, W, 1), dtype=jnp.float32) ** 5
    coords = jax.random.normal(k2, (B, H, W, 2), dtype=jnp.float32)
    y_true = jnp.concatenate([score, coords], axis=-1)               # [B, H, W, 3]
    y_pred = jax.random.normal(k3, (B, 3, H, W), dtype=jnp.float32)  # NCHW, as in torch

    heat, loc = centre_line_loss(y_true, y_pred)
    (heat, loc) = jax.block_until_ready((heat, loc))

    heat_ref, loc_ref = reference_loss(y_true, y_pred)
    np.testing.assert_allclose(np.asarray(heat), np.asarray(heat_ref), rtol=1e-4, atol=1e-5)
    np.testing.assert_allclose(np.asarray(loc), np.asarray(loc_ref), rtol=1e-4, atol=1e-5)

    print("KERNEL_OK")
</pallas_src>

<mosaic_0001>
module attributes {stable_mosaic.version = 11 : i64} {
  func.func @_centre_line_kernel(%arg0: i32, %arg1: memref<1x3x2x128xf32, #tpu.memory_space<vmem>>, %arg2: memref<1x3x2x128xf32, #tpu.memory_space<vmem>>, %arg3: memref<1x1x128xf32, #tpu.memory_space<vmem>>) attributes {dimension_semantics = [#tpu.dimension_semantics<parallel>], iteration_bounds = array<i64: 2>, scalar_prefetch = 0 : i64, scratch_operands = 0 : i64, tpu.core_type = #tpu.core_type<tc>, window_params = [{transform_indices = @transform_0, window_bounds = array<i64: 1, 3, 2, 128>}, {transform_indices = @transform_1, window_bounds = array<i64: 1, 3, 2, 128>}, {transform_indices = @transform_2, window_bounds = array<i64: 1, 1, 128>}]} {
    %c0 = arith.constant 0 : index
    %c0_0 = arith.constant 0 : index
    %c0_1 = arith.constant 0 : index
    %c0_2 = arith.constant 0 : index
    %0 = vector.load %arg1[%c0, %c0_0, %c0_1, %c0_2] : memref<1x3x2x128xf32, #tpu.memory_space<vmem>>, vector<1x1x2x128xf32>
    %1 = vector.shape_cast %0 : vector<1x1x2x128xf32> to vector<1x2x128xf32>
    %c0_3 = arith.constant 0 : index
    %c0_4 = arith.constant 0 : index
    %c0_5 = arith.constant 0 : index
    %c0_6 = arith.constant 0 : index
    %2 = vector.load %arg2[%c0_3, %c0_4, %c0_5, %c0_6] : memref<1x3x2x128xf32, #tpu.memory_space<vmem>>, vector<1x1x2x128xf32>
    %3 = vector.shape_cast %2 : vector<1x1x2x128xf32> to vector<1x2x128xf32>
    %cst = arith.constant 5.000000e-01 : f32
    %4 = vector.broadcast %cst : f32 to vector<1x2x128xf32>
    %5 = arith.cmpf oge, %1, %4 : vector<1x2x128xf32>
    %cst_7 = arith.constant 1.000000e+00 : f32
    %cst_8 = arith.constant 0.000000e+00 : f32
    %6 = vector.broadcast %cst_7 : f32 to vector<1x2x128xf32>
    %7 = vector.broadcast %cst_8 : f32 to vector<1x2x128xf32>
    %8 = arith.select %5, %6, %7 : vector<1x2x128xi1>, vector<1x2x128xf32>
    %cst_9 = arith.constant dense<0.000000e+00> : vector<1x128xf32>
    %9 = vector.multi_reduction <add>, %8, %cst_9 [1] : vector<1x2x128xf32> to vector<1x128xf32>
    %10 = vector.shape_cast %9 : vector<1x128xf32> to vector<1x1x128xf32>
    %cst_10 = arith.constant dense<0.000000e+00> : vector<1x1xf32>
    %11 = vector.multi_reduction <add>, %10, %cst_10 [2] : vector<1x1x128xf32> to vector<1x1xf32>
    %12 = vector.shape_cast %11 : vector<1x1xf32> to vector<1x1x1xf32>
    %cst_11 = arith.constant 3.000000e+00 : f32
    %13 = vector.broadcast %cst_11 : f32 to vector<1x1x1xf32>
    %14 = arith.mulf %13, %12 : vector<1x1x1xf32>
    %cst_12 = arith.constant 2.550000e+02 : f32
    %15 = vector.broadcast %cst_12 : f32 to vector<1x1x1xf32>
    %16 = arith.minimumf %14, %15 : vector<1x1x1xf32>
    %17 = arith.subf %1, %3 : vector<1x2x128xf32>
    %18 = math.absf %17 : vector<1x2x128xf32>
    %cst_13 = arith.constant 1.000000e+00 : f32
    %19 = vector.broadcast %cst_13 : f32 to vector<1x2x128xf32>
    %20 = arith.cmpf olt, %18, %19 : vector<1x2x128xf32>
    %cst_14 = arith.constant 5.000000e-01 : f32
    %21 = vector.broadcast %cst_14 : f32 to vector<1x2x128xf32>
    %22 = arith.mulf %21, %18 : vector<1x2x128xf32>
    %23 = arith.mulf %22, %18 : vector<1x2x128xf32>
    %cst_15 = arith.constant 5.000000e-01 : f32
    %24 = vector.broadcast %cst_15 : f32 to vector<1x2x128xf32>
    %25 = arith.subf %18, %24 : vector<1x2x128xf32>
    %26 = arith.select %20, %23, %25 : vector<1x2x128xi1>, vector<1x2x128xf32>
    %cst_16 = arith.constant 0.000000e+00 : f32
    %27 = vector.broadcast %cst_16 : f32 to vector<1x2x128xf32>
    %28 = arith.select %5, %27, %18 : vector<1x2x128xi1>, vector<1x2x128xf32>
    %cst_17 = arith.constant 0.000000e+00 : f32
    %29 = vector.broadcast %cst_17 : f32 to vector<1x2x128xf32>
    %30 = arith.select %5, %26, %29 : vector<1x2x128xi1>, vector<1x2x128xf32>
    %cst_18 = arith.constant dense<0.000000e+00> : vector<1x128xf32>
    %31 = vector.multi_reduction <add>, %30, %cst_18 [1] : vector<1x2x128xf32> to vector<1x128xf32>
    %32 = vector.shape_cast %31 : vector<1x128xf32> to vector<1x1x128xf32>
    %cst_19 = arith.constant dense<0.000000e+00> : vector<1x1xf32>
    %33 = vector.multi_reduction <add>, %32, %cst_19 [2] : vector<1x1x128xf32> to vector<1x1xf32>
    %34 = vector.shape_cast %33 : vector<1x1xf32> to vector<1x1x1xf32>
    %c0_20 = arith.constant 0 : index
    %c1 = arith.constant 1 : index
    %c0_21 = arith.constant 0 : index
    %c0_22 = arith.constant 0 : index
    %35 = vector.load %arg1[%c0_20, %c1, %c0_21, %c0_22] : memref<1x3x2x128xf32, #tpu.memory_space<vmem>>, vector<1x1x2x128xf32>
    %36 = vector.shape_cast %35 : vector<1x1x2x128xf32> to vector<1x2x128xf32>
    %c0_23 = arith.constant 0 : index
    %c1_24 = arith.constant 1 : index
    %c0_25 = arith.constant 0 : index
    %c0_26 = arith.constant 0 : index
    %37 = vector.load %arg2[%c0_23, %c1_24, %c0_25, %c0_26] : memref<1x3x2x128xf32, #tpu.memory_space<vmem>>, vector<1x1x2x128xf32>
    %38 = vector.shape_cast %37 : vector<1x1x2x128xf32> to vector<1x2x128xf32>
    %39 = arith.subf %36, %38 : vector<1x2x128xf32>
    %40 = math.absf %39 : vector<1x2x128xf32>
    %cst_27 = arith.constant 1.000000e+00 : f32
    %41 = vector.broadcast %cst_27 : f32 to vector<1x2x128xf32>
    %42 = arith.cmpf olt, %40, %41 : vector<1x2x128xf32>
    %cst_28 = arith.constant 5.000000e-01 : f32
    %43 = vector.broadcast %cst_28 : f32 to vector<1x2x128xf32>
    %44 = arith.mulf %43, %40 : vector<1x2x128xf32>
    %45 = arith.mulf %44, %40 : vector<1x2x128xf32>
    %cst_29 = arith.constant 5.000000e-01 : f32
    %46 = vector.broadcast %cst_29 : f32 to vector<1x2x128xf32>
    %47 = arith.subf %40, %46 : vector<1x2x128xf32>
    %48 = arith.select %42, %45, %47 : vector<1x2x128xi1>, vector<1x2x128xf32>
    %c0_30 = arith.constant 0 : index
    %c2 = arith.constant 2 : index
    %c0_31 = arith.constant 0 : index
    %c0_32 = arith.constant 0 : index
    %49 = vector.load %arg1[%c0_30, %c2, %c0_31, %c0_32] : memref<1x3x2x128xf32, #tpu.memory_space<vmem>>, vector<1x1x2x128xf32>
    %50 = vector.shape_cast %49 : vector<1x1x2x128xf32> to vector<1x2x128xf32>
    %c0_33 = arith.constant 0 : index
    %c2_34 = arith.constant 2 : index
    %c0_35 = arith.constant 0 : index
    %c0_36 = arith.constant 0 : index
    %51 = vector.load %arg2[%c0_33, %c2_34, %c0_35, %c0_36] : memref<1x3x2x128xf32, #tpu.memory_space<vmem>>, vector<1x1x2x128xf32>
    %52 = vector.shape_cast %51 : vector<1x1x2x128xf32> to vector<1x2x128xf32>
    %53 = arith.subf %50, %52 : vector<1x2x128xf32>
    %54 = math.absf %53 : vector<1x2x128xf32>
    %cst_37 = arith.constant 1.000000e+00 : f32
    %55 = vector.broadcast %cst_37 : f32 to vector<1x2x128xf32>
    %56 = arith.cmpf olt, %54, %55 : vector<1x2x128xf32>
    %cst_38 = arith.constant 5.000000e-01 : f32
    %57 = vector.broadcast %cst_38 : f32 to vector<1x2x128xf32>
    %58 = arith.mulf %57, %54 : vector<1x2x128xf32>
    %59 = arith.mulf %58, %54 : vector<1x2x128xf32>
    %cst_39 = arith.constant 5.000000e-01 : f32
    %60 = vector.broadcast %cst_39 : f32 to vector<1x2x128xf32>
    %61 = arith.subf %54, %60 : vector<1x2x128xf32>
    %62 = arith.select %56, %59, %61 : vector<1x2x128xi1>, vector<1x2x128xf32>
    %63 = arith.addf %48, %62 : vector<1x2x128xf32>
    %cst_40 = arith.constant 0.000000e+00 : f32
    %64 = vector.broadcast %cst_40 : f32 to vector<1x2x128xf32>
    %65 = arith.select %5, %63, %64 : vector<1x2x128xi1>, vector<1x2x128xf32>
    %cst_41 = arith.constant dense<0.000000e+00> : vector<1x128xf32>
    %66 = vector.multi_reduction <add>, %65, %cst_41 [1] : vector<1x2x128xf32> to vector<1x128xf32>
    %67 = vector.shape_cast %66 : vector<1x128xf32> to vector<1x1x128xf32>
    %cst_42 = arith.constant dense<0.000000e+00> : vector<1x1xf32>
    %68 = vector.multi_reduction <add>, %67, %cst_42 [2] : vector<1x1x128xf32> to vector<1x1xf32>
    %69 = vector.shape_cast %68 : vector<1x1xf32> to vector<1x1x1xf32>
    %cst_43 = arith.constant dense<0xFF800000> : vector<1x128xf32>
    %70 = vector.multi_reduction <maximumf>, %28, %cst_43 [1] : vector<1x2x128xf32> to vector<1x128xf32>
    %71 = vector.shape_cast %70 : vector<1x128xf32> to vector<1x1x128xf32>
    %cst_44 = arith.constant dense<0xFF800000> : vector<1x1xf32>
    %72 = vector.multi_reduction <maximumf>, %71, %cst_44 [2] : vector<1x1x128xf32> to vector<1x1xf32>
    %73 = vector.shape_cast %72 : vector<1x1xf32> to vector<1x1x1xf32>
    %cst_45 = arith.constant -1.000000e+00 : f32
    %74 = vector.broadcast %cst_45 : f32 to vector<1x1x1xf32>
    %cst_46 = arith.constant 0.000000e+00 : f32
    %75 = vector.broadcast %cst_46 : f32 to vector<1x1x1xf32>
    %c0_i32 = arith.constant 0 : i32
    %76 = arith.subf %73, %74 : vector<1x1x1xf32>
    %cst_47 = arith.constant 2.500000e-01 : f32
    %77 = vector.broadcast %cst_47 : f32 to vector<1x1x1xf32>
    %78 = arith.mulf %77, %76 : vector<1x1x1xf32>
    %79 = arith.addf %74, %78 : vector<1x1x1xf32>
    %cst_48 = arith.constant 5.000000e-01 : f32
    %80 = vector.broadcast %cst_48 : f32 to vector<1x1x1xf32>
    %81 = arith.mulf %80, %76 : vector<1x1x1xf32>
    %82 = arith.addf %74, %81 : vector<1x1x1xf32>
    %cst_49 = arith.constant 7.500000e-01 : f32
    %83 = vector.broadcast %cst_49 : f32 to vector<1x1x1xf32>
    %84 = arith.mulf %83, %76 : vector<1x1x1xf32>
    %85 = arith.addf %74, %84 : vector<1x1x1xf32>
    %86 = vector.broadcast %79 : vector<1x1x1xf32> to vector<1x2x128xf32>
    %87 = arith.cmpf ogt, %28, %86 : vector<1x2x128xf32>
    %cst_50 = arith.constant 1.000000e+00 : f32
    %cst_51 = arith.constant 0.000000e+00 : f32
    %88 = vector.broadcast %cst_50 : f32 to vector<1x2x128xf32>
    %89 = vector.broadcast %cst_51 : f32 to vector<1x2x128xf32>
    %90 = arith.select %87, %88, %89 : vector<1x2x128xi1>, vector<1x2x128xf32>
    %cst_52 = arith.constant dense<0.000000e+00> : vector<1x128xf32>
    %91 = vector.multi_reduction <add>, %90, %cst_52 [1] : vector<1x2x128xf32> to vector<1x128xf32>
    %92 = vector.shape_cast %91 : vector<1x128xf32> to vector<1x1x128xf32>
    %cst_53 = arith.constant dense<0.000000e+00> : vector<1x1xf32>
    %93 = vector.multi_reduction <add>, %92, %cst_53 [2] : vector<1x1x128xf32> to vector<1x1xf32>
    %94 = vector.shape_cast %93 : vector<1x1xf32> to vector<1x1x1xf32>
    %95 = vector.broadcast %82 : vector<1x1x1xf32> to vector<1x2x128xf32>
    %96 = arith.cmpf ogt, %28, %95 : vector<1x2x128xf32>
    %cst_54 = arith.constant 1.000000e+00 : f32
    %cst_55 = arith.constant 0.000000e+00 : f32
    %97 = vector.broadcast %cst_54 : f32 to vector<1x2x128xf32>
    %98 = vector.broadcast %cst_55 : f32 to vector<1x2x128xf32>
    %99 = arith.select %96, %97, %98 : vector<1x2x128xi1>, vector<1x2x128xf32>
    %cst_56 = arith.constant dense<0.000000e+00> : vector<1x128xf32>
    %100 = vector.multi_reduction <add>, %99, %cst_56 [1] : vector<1x2x128xf32> to vector<1x128xf32>
    %101 = vector.shape_cast %100 : vector<1x128xf32> to vector<1x1x128xf32>
    %cst_57 = arith.constant dense<0.000000e+00> : vector<1x1xf32>
    %102 = vector.multi_reduction <add>, %101, %cst_57 [2] : vector<1x1x128xf32> to vector<1x1xf32>
    %103 = vector.shape_cast %102 : vector<1x1xf32> to vector<1x1x1xf32>
    %104 = vector.broadcast %85 : vector<1x1x1xf32> to vector<1x2x128xf32>
    %105 = arith.cmpf ogt, %28, %104 : vector<1x2x128xf32>
    %cst_58 = arith.constant 1.000000e+00 : f32
    %cst_59 = arith.constant 0.000000e+00 : f32
    %106 = vector.broadcast %cst_58 : f32 to vector<1x2x128xf32>
    %107 = vector.broadcast %cst_59 : f32 to vector<1x2x128xf32>
    %108 = arith.select %105, %106, %107 : vector<1x2x128xi1>, vector<1x2x128xf32>
    %cst_60 = arith.constant dense<0.000000e+00> : vector<1x128xf32>
    %109 = vector.multi_reduction <add>, %108, %cst_60 [1] : vector<1x2x128xf32> to vector<1x128xf32>
    %110 = vector.shape_cast %109 : vector<1x128xf32> to vector<1x1x128xf32>
    %cst_61 = arith.constant dense<0.000000e+00> : vector<1x1xf32>
    %111 = vector.multi_reduction <add>, %110, %cst_61 [2] : vector<1x1x128xf32> to vector<1x1xf32>
    %112 = vector.shape_cast %111 : vector<1x1xf32> to vector<1x1x1xf32>
    %113 = arith.cmpf oge, %94, %16 : vector<1x1x1xf32>
    %114 = arith.select %113, %79, %74 : vector<1x1x1xi1>, vector<1x1x1xf32>
    %115 = arith.cmpf oge, %103, %16 : vector<1x1x1xf32>
    %116 = arith.select %115, %82, %114 : vector<1x1x1xi1>, vector<1x1x1xf32>
    %117 = arith.cmpf oge, %112, %16 : vector<1x1x1xf32>
    %118 = arith.select %117, %85, %116 : vector<1x1x1xi1>, vector<1x1x1xf32>
    %119 = arith.cmpf olt, %112, %16 : vector<1x1x1xf32>
    %120 = arith.select %119, %85, %73 : vector<1x1x1xi1>, vector<1x1x1xf32>
    %121 = arith.cmpf olt, %112, %16 : vector<1x1x1xf32>
    %122 = arith.select %121, %112, %75 : vector<1x1x1xi1>, vector<1x1x1xf32>
    %123 = arith.cmpf olt, %103, %16 : vector<1x1x1xf32>
    %124 = arith.select %123, %82, %120 : vector<1x1x1xi1>, vector<1x1x1xf32>
    %125 = arith.cmpf olt, %103, %16 : vector<1x1x1xf32>
    %126 = arith.select %125, %103, %122 : vector<1x1x1xi1>, vector<1x1x1xf32>
    %127 = arith.cmpf olt, %94, %16 : vector<1x1x1xf32>
    %128 = arith.select %127, %79, %124 : vector<1x1x1xi1>, vector<1x1x1xf32>
    %129 = arith.cmpf olt, %94, %16 : vector<1x1x1xf32>
    %130 = arith.select %129, %94, %126 : vector<1x1x1xi1>, vector<1x1x1xf32>
    %c1_i32 = arith.constant 1 : i32
    %131 = arith.subf %128, %118 : vector<1x1x1xf32>
    %cst_62 = arith.constant 2.500000e-01 : f32
    %132 = vector.broadcast %cst_62 : f32 to vector<1x1x1xf32>
    %133 = arith.mulf %132, %131 : vector<1x1x1xf32>
    %134 = arith.addf %118, %133 : vector<1x1x1xf32>
    %cst_63 = arith.constant 5.000000e-01 : f32
    %135 = vector.broadcast %cst_63 : f32 to vector<1x1x1xf32>
    %136 = arith.mulf %135, %131 : vector<1x1x1xf32>
    %137 = arith.addf %118, %136 : vector<1x1x1xf32>
    %cst_64 = arith.constant 7.500000e-01 : f32
    %138 = vector.broadcast %cst_64 : f32 to vector<1x1x1xf32>
    %139 = arith.mulf %138, %131 : vector<1x1x1xf32>
    %140 = arith.addf %118, %139 : vector<1x1x1xf32>
    %141 = vector.broadcast %134 : vector<1x1x1xf32> to vector<1x2x128xf32>
    %142 = arith.cmpf ogt, %28, %141 : vector<1x2x128xf32>
    %cst_65 = arith.constant 1.000000e+00 : f32
    %cst_66 = arith.constant 0.000000e+00 : f32
    %143 = vector.broadcast %cst_65 : f32 to vector<1x2x128xf32>
    %144 = vector.broadcast %cst_66 : f32 to vector<1x2x128xf32>
    %145 = arith.select %142, %143, %144 : vector<1x2x128xi1>, vector<1x2x128xf32>
    %cst_67 = arith.constant dense<0.000000e+00> : vector<1x128xf32>
    %146 = vector.multi_reduction <add>, %145, %cst_67 [1] : vector<1x2x128xf32> to vector<1x128xf32>
    %147 = vector.shape_cast %146 : vector<1x128xf32> to vector<1x1x128xf32>
    %cst_68 = arith.constant dense<0.000000e+00> : vector<1x1xf32>
    %148 = vector.multi_reduction <add>, %147, %cst_68 [2] : vector<1x1x128xf32> to vector<1x1xf32>
    %149 = vector.shape_cast %148 : vector<1x1xf32> to vector<1x1x1xf32>
    %150 = vector.broadcast %137 : vector<1x1x1xf32> to vector<1x2x128xf32>
    %151 = arith.cmpf ogt, %28, %150 : vector<1x2x128xf32>
    %cst_69 = arith.constant 1.000000e+00 : f32
    %cst_70 = arith.constant 0.000000e+00 : f32
    %152 = vector.broadcast %cst_69 : f32 to vector<1x2x128xf32>
    %153 = vector.broadcast %cst_70 : f32 to vector<1x2x128xf32>
    %154 = arith.select %151, %152, %153 : vector<1x2x128xi1>, vector<1x2x128xf32>
    %cst_71 = arith.constant dense<0.000000e+00> : vector<1x128xf32>
    %155 = vector.multi_reduction <add>, %154, %cst_71 [1] : vector<1x2x128xf32> to vector<1x128xf32>
    %156 = vector.shape_cast %155 : vector<1x128xf32> to vector<1x1x128xf32>
    %cst_72 = arith.constant dense<0.000000e+00> : vector<1x1xf32>
    %157 = vector.multi_reduction <add>, %156, %cst_72 [2] : vector<1x1x128xf32> to vector<1x1xf32>
    %158 = vector.shape_cast %157 : vector<1x1xf32> to vector<1x1x1xf32>
    %159 = vector.broadcast %140 : vector<1x1x1xf32> to vector<1x2x128xf32>
    %160 = arith.cmpf ogt, %28, %159 : vector<1x2x128xf32>
    %cst_73 = arith.constant 1.000000e+00 : f32
    %cst_74 = arith.constant 0.000000e+00 : f32
    %161 = vector.broadcast %cst_73 : f32 to vector<1x2x128xf32>
    %162 = vector.broadcast %cst_74 : f32 to vector<1x2x128xf32>
    %163 = arith.select %160, %161, %162 : vector<1x2x128xi1>, vector<1x2x128xf32>
    %cst_75 = arith.constant dense<0.000000e+00> : vector<1x128xf32>
    %164 = vector.multi_reduction <add>, %163, %cst_75 [1] : vector<1x2x128xf32> to vector<1x128xf32>
    %165 = vector.shape_cast %164 : vector<1x128xf32> to vector<1x1x128xf32>
    %cst_76 = arith.constant dense<0.000000e+00> : vector<1x1xf32>
    %166 = vector.multi_reduction <add>, %165, %cst_76 [2] : vector<1x1x128xf32> to vector<1x1xf32>
    %167 = vector.shape_cast %166 : vector<1x1xf32> to vector<1x1x1xf32>
    %168 = arith.cmpf oge, %149, %16 : vector<1x1x1xf32>
    %169 = arith.select %168, %134, %118 : vector<1x1x1xi1>, vector<1x1x1xf32>
    %170 = arith.cmpf oge, %158, %16 : vector<1x1x1xf32>
    %171 = arith.select %170, %137, %169 : vector<1x1x1xi1>, vector<1x1x1xf32>
    %172 = arith.cmpf oge, %167, %16 : vector<1x1x1xf32>
    %173 = arith.select %172, %140, %171 : vector<1x1x1xi1>, vector<1x1x1xf32>
    %174 = arith.cmpf olt, %167, %16 : vector<1x1x1xf32>
    %175 = arith.select %174, %140, %128 : vector<1x1x1xi1>, vector<1x1x1xf32>
    %176 = arith.cmpf olt, %167, %16 : vector<1x1x1xf32>
    %177 = arith.select %176, %167, %130 : vector<1x1x1xi1>, vector<1x1x1xf32>
    %178 = arith.cmpf olt, %158, %16 : vector<1x1x1xf32>
    %179 = arith.select %178, %137, %175 : vector<1x1x1xi1>, vector<1x1x1xf32>
    %180 = arith.cmpf olt, %158, %16 : vector<1x1x1xf32>
    %181 = arith.select %180, %158, %177 : vector<1x1x1xi1>, vector<1x1x1xf32>
    %182 = arith.cmpf olt, %149, %16 : vector<1x1x1xf32>
    %183 = arith.select %182, %134, %179 : vector<1x1x1xi1>, vector<1x1x1xf32>
    %184 = arith.cmpf olt, %149, %16 : vector<1x1x1xf32>
    %185 = arith.select %184, %149, %181 : vector<1x1x1xi1>, vector<1x1x1xf32>
    %c2_i32 = arith.constant 2 : i32
    %186 = arith.subf %183, %173 : vector<1x1x1xf32>
    %cst_77 = arith.constant 2.500000e-01 : f32
    %187 = vector.broadcast %cst_77 : f32 to vector<1x1x1xf32>
    %188 = arith.mulf %187, %186 : vector<1x1x1xf32>
    %189 = arith.addf %173, %188 : vector<1x1x1xf32>
    %cst_78 = arith.constant 5.000000e-01 : f32
    %190 = vector.broadcast %cst_78 : f32 to vector<1x1x1xf32>
    %191 = arith.mulf %190, %186 : vector<1x1x1xf32>
    %192 = arith.addf %173, %191 : vector<1x1x1xf32>
    %cst_79 = arith.constant 7.500000e-01 : f32
    %193 = vector.broadcast %cst_79 : f32 to vector<1x1x1xf32>
    %194 = arith.mulf %193, %186 : vector<1x1x1xf32>
    %195 = arith.addf %173, %194 : vector<1x1x1xf32>
    %196 = vector.broadcast %189 : vector<1x1x1xf32> to vector<1x2x128xf32>
    %197 = arith.cmpf ogt, %28, %196 : vector<1x2x128xf32>
    %cst_80 = arith.constant 1.000000e+00 : f32
    %cst_81 = arith.constant 0.000000e+00 : f32
    %198 = vector.broadcast %cst_80 : f32 to vector<1x2x128xf32>
    %199 = vector.broadcast %cst_81 : f32 to vector<1x2x128xf32>
    %200 = arith.select %197, %198, %199 : vector<1x2x128xi1>, vector<1x2x128xf32>
    %cst_82 = arith.constant dense<0.000000e+00> : vector<1x128xf32>
    %201 = vector.multi_reduction <add>, %200, %cst_82 [1] : vector<1x2x128xf32> to vector<1x128xf32>
    %202 = vector.shape_cast %201 : vector<1x128xf32> to vector<1x1x128xf32>
    %cst_83 = arith.constant dense<0.000000e+00> : vector<1x1xf32>
    %203 = vector.multi_reduction <add>, %202, %cst_83 [2] : vector<1x1x128xf32> to vector<1x1xf32>
    %204 = vector.shape_cast %203 : vector<1x1xf32> to vector<1x1x1xf32>
    %205 = vector.broadcast %192 : vector<1x1x1xf32> to vector<1x2x128xf32>
    %206 = arith.cmpf ogt, %28, %205 : vector<1x2x128xf32>
    %cst_84 = arith.constant 1.000000e+00 : f32
    %cst_85 = arith.constant 0.000000e+00 : f32
    %207 = vector.broadcast %cst_84 : f32 to vector<1x2x128xf32>
    %208 = vector.broadcast %cst_85 : f32 to vector<1x2x128xf32>
    %209 = arith.select %206, %207, %208 : vector<1x2x128xi1>, vector<1x2x128xf32>
    %cst_86 = arith.constant dense<0.000000e+00> : vector<1x128xf32>
    %210 = vector.multi_reduction <add>, %209, %cst_86 [1] : vector<1x2x128xf32> to vector<1x128xf32>
    %211 = vector.shape_cast %210 : vector<1x128xf32> to vector<1x1x128xf32>
    %cst_87 = arith.constant dense<0.000000e+00> : vector<1x1xf32>
    %212 = vector.multi_reduction <add>, %211, %cst_87 [2] : vector<1x1x128xf32> to vector<1x1xf32>
    %213 = vector.shape_cast %212 : vector<1x1xf32> to vector<1x1x1xf32>
    %214 = vector.broadcast %195 : vector<1x1x1xf32> to vector<1x2x128xf32>
    %215 = arith.cmpf ogt, %28, %214 : vector<1x2x128xf32>
    %cst_88 = arith.constant 1.000000e+00 : f32
    %cst_89 = arith.constant 0.000000e+00 : f32
    %216 = vector.broadcast %cst_88 : f32 to vector<1x2x128xf32>
    %217 = vector.broadcast %cst_89 : f32 to vector<1x2x128xf32>
    %218 = arith.select %215, %216, %217 : vector<1x2x128xi1>, vector<1x2x128xf32>
    %cst_90 = arith.constant dense<0.000000e+00> : vector<1x128xf32>
    %219 = vector.multi_reduction <add>, %218, %cst_90 [1] : vector<1x2x128xf32> to vector<1x128xf32>
    %220 = vector.shape_cast %219 : vector<1x128xf32> to vector<1x1x128xf32>
    %cst_91 = arith.constant dense<0.000000e+00> : vector<1x1xf32>
    %221 = vector.multi_reduction <add>, %220, %cst_91 [2] : vector<1x1x128xf32> to vector<1x1xf32>
    %222 = vector.shape_cast %221 : vector<1x1xf32> to vector<1x1x1xf32>
    %223 = arith.cmpf oge, %204, %16 : vector<1x1x1xf32>
    %224 = arith.select %223, %189, %173 : vector<1x1x1xi1>, vector<1x1x1xf32>
    %225 = arith.cmpf oge, %213, %16 : vector<1x1x1xf32>
    %226 = arith.select %225, %192, %224 : vector<1x1x1xi1>, vector<1x1x1xf32>
    %227 = arith.cmpf oge, %222, %16 : vector<1x1x1xf32>
    %228 = arith.select %227, %195, %226 : vector<1x1x1xi1>, vector<1x1x1xf32>
    %229 = arith.cmpf olt, %222, %16 : vector<1x1x1xf32>
    %230 = arith.select %229, %195, %183 : vector<1x1x1xi1>, vector<1x1x1xf32>
    %231 = arith.cmpf olt, %222, %16 : vector<1x1x1xf32>
    %232 = arith.select %231, %222, %185 : vector<1x1x1xi1>, vector<1x1x1xf32>
    %233 = arith.cmpf olt, %213, %16 : vector<1x1x1xf32>
    %234 = arith.select %233, %192, %230 : vector<1x1x1xi1>, vector<1x1x1xf32>
    %235 = arith.cmpf olt, %213, %16 : vector<1x1x1xf32>
    %236 = arith.select %235, %213, %232 : vector<1x1x1xi1>, vector<1x1x1xf32>
    %237 = arith.cmpf olt, %204, %16 : vector<1x1x1xf32>
    %238 = arith.select %237, %189, %234 : vector<1x1x1xi1>, vector<1x1x1xf32>
    %239 = arith.cmpf olt, %204, %16 : vector<1x1x1xf32>
    %240 = arith.select %239, %204, %236 : vector<1x1x1xi1>, vector<1x1x1xf32>
    %c3_i32 = arith.constant 3 : i32
    %241 = arith.subf %238, %228 : vector<1x1x1xf32>
    %cst_92 = arith.constant 2.500000e-01 : f32
    %242 = vector.broadcast %cst_92 : f32 to vector<1x1x1xf32>
    %243 = arith.mulf %242, %241 : vector<1x1x1xf32>
    %244 = arith.addf %228, %243 : vector<1x1x1xf32>
    %cst_93 = arith.constant 5.000000e-01 : f32
    %245 = vector.broadcast %cst_93 : f32 to vector<1x1x1xf32>
    %246 = arith.mulf %245, %241 : vector<1x1x1xf32>
    %247 = arith.addf %228, %246 : vector<1x1x1xf32>
    %cst_94 = arith.constant 7.500000e-01 : f32
    %248 = vector.broadcast %cst_94 : f32 to vector<1x1x1xf32>
    %249 = arith.mulf %248, %241 : vector<1x1x1xf32>
    %250 = arith.addf %228, %249 : vector<1x1x1xf32>
    %251 = vector.broadcast %244 : vector<1x1x1xf32> to vector<1x2x128xf32>
    %252 = arith.cmpf ogt, %28, %251 : vector<1x2x128xf32>
    %cst_95 = arith.constant 1.000000e+00 : f32
    %cst_96 = arith.constant 0.000000e+00 : f32
    %253 = vector.broadcast %cst_95 : f32 to vector<1x2x128xf32>
    %254 = vector.broadcast %cst_96 : f32 to vector<1x2x128xf32>
    %255 = arith.select %252, %253, %254 : vector<1x2x128xi1>, vector<1x2x128xf32>
    %cst_97 = arith.constant dense<0.000000e+00> : vector<1x128xf32>
    %256 = vector.multi_reduction <add>, %255, %cst_97 [1] : vector<1x2x128xf32> to vector<1x128xf32>
    %257 = vector.shape_cast %256 : vector<1x128xf32> to vector<1x1x128xf32>
    %cst_98 = arith.constant dense<0.000000e+00> : vector<1x1xf32>
    %258 = vector.multi_reduction <add>, %257, %cst_98 [2] : vector<1x1x128xf32> to vector<1x1xf32>
    %259 = vector.shape_cast %258 : vector<1x1xf32> to vector<1x1x1xf32>
    %260 = vector.broadcast %247 : vector<1x1x1xf32> to vector<1x2x128xf32>
    %261 = arith.cmpf ogt, %28, %260 : vector<1x2x128xf32>
    %cst_99 = arith.constant 1.000000e+00 : f32
    %cst_100 = arith.constant 0.000000e+00 : f32
    %262 = vector.broadcast %cst_99 : f32 to vector<1x2x128xf32>
    %263 = vector.broadcast %cst_100 : f32 to vector<1x2x128xf32>
    %264 = arith.select %261, %262, %263 : vector<1x2x128xi1>, vector<1x2x128xf32>
    %cst_101 = arith.constant dense<0.000000e+00> : vector<1x128xf32>
    %265 = vector.multi_reduction <add>, %264, %cst_101 [1] : vector<1x2x128xf32> to vector<1x128xf32>
    %266 = vector.shape_cast %265 : vector<1x128xf32> to vector<1x1x128xf32>
    %cst_102 = arith.constant dense<0.000000e+00> : vector<1x1xf32>
    %267 = vector.multi_reduction <add>, %266, %cst_102 [2] : vector<1x1x128xf32> to vector<1x1xf32>
    %268 = vector.shape_cast %267 : vector<1x1xf32> to vector<1x1x1xf32>
    %269 = vector.broadcast %250 : vector<1x1x1xf32> to vector<1x2x128xf32>
    %270 = arith.cmpf ogt, %28, %269 : vector<1x2x128xf32>
    %cst_103 = arith.constant 1.000000e+00 : f32
    %cst_104 = arith.constant 0.000000e+00 : f32
    %271 = vector.broadcast %cst_103 : f32 to vector<1x2x128xf32>
    %272 = vector.broadcast %cst_104 : f32 to vector<1x2x128xf32>
    %273 = arith.select %270, %271, %272 : vector<1x2x128xi1>, vector<1x2x128xf32>
    %cst_105 = arith.constant dense<0.000000e+00> : vector<1x128xf32>
    %274 = vector.multi_reduction <add>, %273, %cst_105 [1] : vector<1x2x128xf32> to vector<1x128xf32>
    %275 = vector.shape_cast %274 : vector<1x128xf32> to vector<1x1x128xf32>
    %cst_106 = arith.constant dense<0.000000e+00> : vector<1x1xf32>
    %276 = vector.multi_reduction <add>, %275, %cst_106 [2] : vector<1x1x128xf32> to vector<1x1xf32>
    %277 = vector.shape_cast %276 : vector<1x1xf32> to vector<1x1x1xf32>
    %278 = arith.cmpf oge, %259, %16 : vector<1x1x1xf32>
    %279 = arith.select %278, %244, %228 : vector<1x1x1xi1>, vector<1x1x1xf32>
    %280 = arith.cmpf oge, %268, %16 : vector<1x1x1xf32>
    %281 = arith.select %280, %247, %279 : vector<1x1x1xi1>, vector<1x1x1xf32>
    %282 = arith.cmpf oge, %277, %16 : vector<1x1x1xf32>
    %283 = arith.select %282, %250, %281 : vector<1x1x1xi1>, vector<1x1x1xf32>
    %284 = arith.cmpf olt, %277, %16 : vector<1x1x1xf32>
    %285 = arith.select %284, %250, %238 : vector<1x1x1xi1>, vector<1x1x1xf32>
    %286 = arith.cmpf olt, %277, %16 : vector<1x1x1xf32>
    %287 = arith.select %286, %277, %240 : vector<1x1x1xi1>, vector<1x1x1xf32>
    %288 = arith.cmpf olt, %268, %16 : vector<1x1x1xf32>
    %289 = arith.select %288, %247, %285 : vector<1x1x1xi1>, vector<1x1x1xf32>
    %290 = arith.cmpf olt, %268, %16 : vector<1x1x1xf32>
    %291 = arith.select %290, %268, %287 : vector<1x1x1xi1>, vector<1x1x1xf32>
    %292 = arith.cmpf olt, %259, %16 : vector<1x1x1xf32>
    %293 = arith.select %292, %244, %289 : vector<1x1x1xi1>, vector<1x1x1xf32>
    %294 = arith.cmpf olt, %259, %16 : vector<1x1x1xf32>
    %295 = arith.select %294, %259, %291 : vector<1x1x1xi1>, vector<1x1x1xf32>
    %c4_i32 = arith.constant 4 : i32
    %296 = arith.subf %293, %283 : vector<1x1x1xf32>
    %cst_107 = arith.constant 2.500000e-01 : f32
    %297 = vector.broadcast %cst_107 : f32 to vector<1x1x1xf32>
    %298 = arith.mulf %297, %296 : vector<1x1x1xf32>
    %299 = arith.addf %283, %298 : vector<1x1x1xf32>
    %cst_108 = arith.constant 5.000000e-01 : f32
    %300 = vector.broadcast %cst_108 : f32 to vector<1x1x1xf32>
    %301 = arith.mulf %300, %296 : vector<1x1x1xf32>
    %302 = arith.addf %283, %301 : vector<1x1x1xf32>
    %cst_109 = arith.constant 7.500000e-01 : f32
    %303 = vector.broadcast %cst_109 : f32 to vector<1x1x1xf32>
    %304 = arith.mulf %303, %296 : vector<1x1x1xf32>
    %305 = arith.addf %283, %304 : vector<1x1x1xf32>
    %306 = vector.broadcast %299 : vector<1x1x1xf32> to vector<1x2x128xf32>
    %307 = arith.cmpf ogt, %28, %306 : vector<1x2x128xf32>
    %cst_110 = arith.constant 1.000000e+00 : f32
    %cst_111 = arith.constant 0.000000e+00 : f32
    %308 = vector.broadcast %cst_110 : f32 to vector<1x2x128xf32>
    %309 = vector.broadcast %cst_111 : f32 to vector<1x2x128xf32>
    %310 = arith.select %307, %308, %309 : vector<1x2x128xi1>, vector<1x2x128xf32>
    %cst_112 = arith.constant dense<0.000000e+00> : vector<1x128xf32>
    %311 = vector.multi_reduction <add>, %310, %cst_112 [1] : vector<1x2x128xf32> to vector<1x128xf32>
    %312 = vector.shape_cast %311 : vector<1x128xf32> to vector<1x1x128xf32>
    %cst_113 = arith.constant dense<0.000000e+00> : vector<1x1xf32>
    %313 = vector.multi_reduction <add>, %312, %cst_113 [2] : vector<1x1x128xf32> to vector<1x1xf32>
    %314 = vector.shape_cast %313 : vector<1x1xf32> to vector<1x1x1xf32>
    %315 = vector.broadcast %302 : vector<1x1x1xf32> to vector<1x2x128xf32>
    %316 = arith.cmpf ogt, %28, %315 : vector<1x2x128xf32>
    %cst_114 = arith.constant 1.000000e+00 : f32
    %cst_115 = arith.constant 0.000000e+00 : f32
    %317 = vector.broadcast %cst_114 : f32 to vector<1x2x128xf32>
    %318 = vector.broadcast %cst_115 : f32 to vector<1x2x128xf32>
    %319 = arith.select %316, %317, %318 : vector<1x2x128xi1>, vector<1x2x128xf32>
    %cst_116 = arith.constant dense<0.000000e+00> : vector<1x128xf32>
    %320 = vector.multi_reduction <add>, %319, %cst_116 [1] : vector<1x2x128xf32> to vector<1x128xf32>
    %321 = vector.shape_cast %320 : vector<1x128xf32> to vector<1x1x128xf32>
    %cst_117 = arith.constant dense<0.000000e+00> : vector<1x1xf32>
    %322 = vector.multi_reduction <add>, %321, %cst_117 [2] : vector<1x1x128xf32> to vector<1x1xf32>
    %323 = vector.shape_cast %322 : vector<1x1xf32> to vector<1x1x1xf32>
    %324 = vector.broadcast %305 : vector<1x1x1xf32> to vector<1x2x128xf32>
    %325 = arith.cmpf ogt, %28, %324 : vector<1x2x128xf32>
    %cst_118 = arith.constant 1.000000e+00 : f32
    %cst_119 = arith.constant 0.000000e+00 : f32
    %326 = vector.broadcast %cst_118 : f32 to vector<1x2x128xf32>
    %327 = vector.broadcast %cst_119 : f32 to vector<1x2x128xf32>
    %328 = arith.select %325, %326, %327 : vector<1x2x128xi1>, vector<1x2x128xf32>
    %cst_120 = arith.constant dense<0.000000e+00> : vector<1x128xf32>
    %329 = vector.multi_reduction <add>, %328, %cst_120 [1] : vector<1x2x128xf32> to vector<1x128xf32>
    %330 = vector.shape_cast %329 : vector<1x128xf32> to vector<1x1x128xf32>
    %cst_121 = arith.constant dense<0.000000e+00> : vector<1x1xf32>
    %331 = vector.multi_reduction <add>, %330, %cst_121 [2] : vector<1x1x128xf32> to vector<1x1xf32>
    %332 = vector.shape_cast %331 : vector<1x1xf32> to vector<1x1x1xf32>
    %333 = arith.cmpf oge, %314, %16 : vector<1x1x1xf32>
    %334 = arith.select %333, %299, %283 : vector<1x1x1xi1>, vector<1x1x1xf32>
    %335 = arith.cmpf oge, %323, %16 : vector<1x1x1xf32>
    %336 = arith.select %335, %302, %334 : vector<1x1x1xi1>, vector<1x1x1xf32>
    %337 = arith.cmpf oge, %332, %16 : vector<1x1x1xf32>
    %338 = arith.select %337, %305, %336 : vector<1x1x1xi1>, vector<1x1x1xf32>
    %339 = arith.cmpf olt, %332, %16 : vector<1x1x1xf32>
    %340 = arith.select %339, %305, %293 : vector<1x1x1xi1>, vector<1x1x1xf32>
    %341 = arith.cmpf olt, %332, %16 : vector<1x1x1xf32>
    %342 = arith.select %341, %332, %295 : vector<1x1x1xi1>, vector<1x1x1xf32>
    %343 = arith.cmpf olt, %323, %16 : vector<1x1x1xf32>
    %344 = arith.select %343, %302, %340 : vector<1x1x1xi1>, vector<1x1x1xf32>
    %345 = arith.cmpf olt, %323, %16 : vector<1x1x1xf32>
    %346 = arith.select %345, %323, %342 : vector<1x1x1xi1>, vector<1x1x1xf32>
    %347 = arith.cmpf olt, %314, %16 : vector<1x1x1xf32>
    %348 = arith.select %347, %299, %344 : vector<1x1x1xi1>, vector<1x1x1xf32>
    %349 = arith.cmpf olt, %314, %16 : vector<1x1x1xf32>
    %350 = arith.select %349, %314, %346 : vector<1x1x1xi1>, vector<1x1x1xf32>
    %c5_i32 = arith.constant 5 : i32
    %351 = arith.subf %348, %338 : vector<1x1x1xf32>
    %cst_122 = arith.constant 2.500000e-01 : f32
    %352 = vector.broadcast %cst_122 : f32 to vector<1x1x1xf32>
    %353 = arith.mulf %352, %351 : vector<1x1x1xf32>
    %354 = arith.addf %338, %353 : vector<1x1x1xf32>
    %cst_123 = arith.constant 5.000000e-01 : f32
    %355 = vector.broadcast %cst_123 : f32 to vector<1x1x1xf32>
    %356 = arith.mulf %355, %351 : vector<1x1x1xf32>
    %357 = arith.addf %338, %356 : vector<1x1x1xf32>
    %cst_124 = arith.constant 7.500000e-01 : f32
    %358 = vector.broadcast %cst_124 : f32 to vector<1x1x1xf32>
    %359 = arith.mulf %358, %351 : vector<1x1x1xf32>
    %360 = arith.addf %338, %359 : vector<1x1x1xf32>
    %361 = vector.broadcast %354 : vector<1x1x1xf32> to vector<1x2x128xf32>
    %362 = arith.cmpf ogt, %28, %361 : vector<1x2x128xf32>
    %cst_125 = arith.constant 1.000000e+00 : f32
    %cst_126 = arith.constant 0.000000e+00 : f32
    %363 = vector.broadcast %cst_125 : f32 to vector<1x2x128xf32>
    %364 = vector.broadcast %cst_126 : f32 to vector<1x2x128xf32>
    %365 = arith.select %362, %363, %364 : vector<1x2x128xi1>, vector<1x2x128xf32>
    %cst_127 = arith.constant dense<0.000000e+00> : vector<1x128xf32>
    %366 = vector.multi_reduction <add>, %365, %cst_127 [1] : vector<1x2x128xf32> to vector<1x128xf32>
    %367 = vector.shape_cast %366 : vector<1x128xf32> to vector<1x1x128xf32>
    %cst_128 = arith.constant dense<0.000000e+00> : vector<1x1xf32>
    %368 = vector.multi_reduction <add>, %367, %cst_128 [2] : vector<1x1x128xf32> to vector<1x1xf32>
    %369 = vector.shape_cast %368 : vector<1x1xf32> to vector<1x1x1xf32>
    %370 = vector.broadcast %357 : vector<1x1x1xf32> to vector<1x2x128xf32>
    %371 = arith.cmpf ogt, %28, %370 : vector<1x2x128xf32>
    %cst_129 = arith.constant 1.000000e+00 : f32
    %cst_130 = arith.constant 0.000000e+00 : f32
    %372 = vector.broadcast %cst_129 : f32 to vector<1x2x128xf32>
    %373 = vector.broadcast %cst_130 : f32 to vector<1x2x128xf32>
    %374 = arith.select %371, %372, %373 : vector<1x2x128xi1>, vector<1x2x128xf32>
    %cst_131 = arith.constant dense<0.000000e+00> : vector<1x128xf32>
    %375 = vector.multi_reduction <add>, %374, %cst_131 [1] : vector<1x2x128xf32> to vector<1x128xf32>
    %376 = vector.shape_cast %375 : vector<1x128xf32> to vector<1x1x128xf32>
    %cst_132 = arith.constant dense<0.000000e+00> : vector<1x1xf32>
    %377 = vector.multi_reduction <add>, %376, %cst_132 [2] : vector<1x1x128xf32> to vector<1x1xf32>
    %378 = vector.shape_cast %377 : vector<1x1xf32> to vector<1x1x1xf32>
    %379 = vector.broadcast %360 : vector<1x1x1xf32> to vector<1x2x128xf32>
    %380 = arith.cmpf ogt, %28, %379 : vector<1x2x128xf32>
    %cst_133 = arith.constant 1.000000e+00 : f32
    %cst_134 = arith.constant 0.000000e+00 : f32
    %381 = vector.broadcast %cst_133 : f32 to vector<1x2x128xf32>
    %382 = vector.broadcast %cst_134 : f32 to vector<1x2x128xf32>
    %383 = arith.select %380, %381, %382 : vector<1x2x128xi1>, vector<1x2x128xf32>
    %cst_135 = arith.constant dense<0.000000e+00> : vector<1x128xf32>
    %384 = vector.multi_reduction <add>, %383, %cst_135 [1] : vector<1x2x128xf32> to vector<1x128xf32>
    %385 = vector.shape_cast %384 : vector<1x128xf32> to vector<1x1x128xf32>
    %cst_136 = arith.constant dense<0.000000e+00> : vector<1x1xf32>
    %386 = vector.multi_reduction <add>, %385, %cst_136 [2] : vector<1x1x128xf32> to vector<1x1xf32>
    %387 = vector.shape_cast %386 : vector<1x1xf32> to vector<1x1x1xf32>
    %388 = arith.cmpf oge, %369, %16 : vector<1x1x1xf32>
    %389 = arith.select %388, %354, %338 : vector<1x1x1xi1>, vector<1x1x1xf32>
    %390 = arith.cmpf oge, %378, %16 : vector<1x1x1xf32>
    %391 = arith.select %390, %357, %389 : vector<1x1x1xi1>, vector<1x1x1xf32>
    %392 = arith.cmpf oge, %387, %16 : vector<1x1x1xf32>
    %393 = arith.select %392, %360, %391 : vector<1x1x1xi1>, vector<1x1x1xf32>
    %394 = arith.cmpf olt, %387, %16 : vector<1x1x1xf32>
    %395 = arith.select %394, %360, %348 : vector<1x1x1xi1>, vector<1x1x1xf32>
    %396 = arith.cmpf olt, %387, %16 : vector<1x1x1xf32>
    %397 = arith.select %396, %387, %350 : vector<1x1x1xi1>, vector<1x1x1xf32>
    %398 = arith.cmpf olt, %378, %16 : vector<1x1x1xf32>
    %399 = arith.select %398, %357, %395 : vector<1x1x1xi1>, vector<1x1x1xf32>
    %400 = arith.cmpf olt, %378, %16 : vector<1x1x1xf32>
    %401 = arith.select %400, %378, %397 : vector<1x1x1xi1>, vector<1x1x1xf32>
    %402 = arith.cmpf olt, %369, %16 : vector<1x1x1xf32>
    %403 = arith.select %402, %354, %399 : vector<1x1x1xi1>, vector<1x1x1xf32>
    %404 = arith.cmpf olt, %369, %16 : vector<1x1x1xf32>
    %405 = arith.select %404, %369, %401 : vector<1x1x1xi1>, vector<1x1x1xf32>
    %c6_i32 = arith.constant 6 : i32
    %406 = arith.subf %403, %393 : vector<1x1x1xf32>
    %cst_137 = arith.constant 2.500000e-01 : f32
    %407 = vector.broadcast %cst_137 : f32 to vector<1x1x1xf32>
    %408 = arith.mulf %407, %406 : vector<1x1x1xf32>
    %409 = arith.addf %393, %408 : vector<1x1x1xf32>
    %cst_138 = arith.constant 5.000000e-01 : f32
    %410 = vector.broadcast %cst_138 : f32 to vector<1x1x1xf32>
    %411 = arith.mulf %410, %406 : vector<1x1x1xf32>
    %412 = arith.addf %393, %411 : vector<1x1x1xf32>
    %cst_139 = arith.constant 7.500000e-01 : f32
    %413 = vector.broadcast %cst_139 : f32 to vector<1x1x1xf32>
    %414 = arith.mulf %413, %406 : vector<1x1x1xf32>
    %415 = arith.addf %393, %414 : vector<1x1x1xf32>
    %416 = vector.broadcast %409 : vector<1x1x1xf32> to vector<1x2x128xf32>
    %417 = arith.cmpf ogt, %28, %416 : vector<1x2x128xf32>
    %cst_140 = arith.constant 1.000000e+00 : f32
    %cst_141 = arith.constant 0.000000e+00 : f32
    %418 = vector.broadcast %cst_140 : f32 to vector<1x2x128xf32>
    %419 = vector.broadcast %cst_141 : f32 to vector<1x2x128xf32>
    %420 = arith.select %417, %418, %419 : vector<1x2x128xi1>, vector<1x2x128xf32>
    %cst_142 = arith.constant dense<0.000000e+00> : vector<1x128xf32>
    %421 = vector.multi_reduction <add>, %420, %cst_142 [1] : vector<1x2x128xf32> to vector<1x128xf32>
    %422 = vector.shape_cast %421 : vector<1x128xf32> to vector<1x1x128xf32>
    %cst_143 = arith.constant dense<0.000000e+00> : vector<1x1xf32>
    %423 = vector.multi_reduction <add>, %422, %cst_143 [2] : vector<1x1x128xf32> to vector<1x1xf32>
    %424 = vector.shape_cast %423 : vector<1x1xf32> to vector<1x1x1xf32>
    %425 = vector.broadcast %412 : vector<1x1x1xf32> to vector<1x2x128xf32>
    %426 = arith.cmpf ogt, %28, %425 : vector<1x2x128xf32>
    %cst_144 = arith.constant 1.000000e+00 : f32
    %cst_145 = arith.constant 0.000000e+00 : f32
    %427 = vector.broadcast %cst_144 : f32 to vector<1x2x128xf32>
    %428 = vector.broadcast %cst_145 : f32 to vector<1x2x128xf32>
    %429 = arith.select %426, %427, %428 : vector<1x2x128xi1>, vector<1x2x128xf32>
    %cst_146 = arith.constant dense<0.000000e+00> : vector<1x128xf32>
    %430 = vector.multi_reduction <add>, %429, %cst_146 [1] : vector<1x2x128xf32> to vector<1x128xf32>
    %431 = vector.shape_cast %430 : vector<1x128xf32> to vector<1x1x128xf32>
    %cst_147 = arith.constant dense<0.000000e+00> : vector<1x1xf32>
    %432 = vector.multi_reduction <add>, %431, %cst_147 [2] : vector<1x1x128xf32> to vector<1x1xf32>
    %433 = vector.shape_cast %432 : vector<1x1xf32> to vector<1x1x1xf32>
    %434 = vector.broadcast %415 : vector<1x1x1xf32> to vector<1x2x128xf32>
    %435 = arith.cmpf ogt, %28, %434 : vector<1x2x128xf32>
    %cst_148 = arith.constant 1.000000e+00 : f32
    %cst_149 = arith.constant 0.000000e+00 : f32
    %436 = vector.broadcast %cst_148 : f32 to vector<1x2x128xf32>
    %437 = vector.broadcast %cst_149 : f32 to vector<1x2x128xf32>
    %438 = arith.select %435, %436, %437 : vector<1x2x128xi1>, vector<1x2x128xf32>
    %cst_150 = arith.constant dense<0.000000e+00> : vector<1x128xf32>
    %439 = vector.multi_reduction <add>, %438, %cst_150 [1] : vector<1x2x128xf32> to vector<1x128xf32>
    %440 = vector.shape_cast %439 : vector<1x128xf32> to vector<1x1x128xf32>
    %cst_151 = arith.constant dense<0.000000e+00> : vector<1x1xf32>
    %441 = vector.multi_reduction <add>, %440, %cst_151 [2] : vector<1x1x128xf32> to vector<1x1xf32>
    %442 = vector.shape_cast %441 : vector<1x1xf32> to vector<1x1x1xf32>
    %443 = arith.cmpf oge, %424, %16 : vector<1x1x1xf32>
    %444 = arith.select %443, %409, %393 : vector<1x1x1xi1>, vector<1x1x1xf32>
    %445 = arith.cmpf oge, %433, %16 : vector<1x1x1xf32>
    %446 = arith.select %445, %412, %444 : vector<1x1x1xi1>, vector<1x1x1xf32>
    %447 = arith.cmpf oge, %442, %16 : vector<1x1x1xf32>
    %448 = arith.select %447, %415, %446 : vector<1x1x1xi1>, vector<1x1x1xf32>
    %449 = arith.cmpf olt, %442, %16 : vector<1x1x1xf32>
    %450 = arith.select %449, %415, %403 : vector<1x1x1xi1>, vector<1x1x1xf32>
    %451 = arith.cmpf olt, %442, %16 : vector<1x1x1xf32>
    %452 = arith.select %451, %442, %405 : vector<1x1x1xi1>, vector<1x1x1xf32>
    %453 = arith.cmpf olt, %433, %16 : vector<1x1x1xf32>
    %454 = arith.select %453, %412, %450 : vector<1x1x1xi1>, vector<1x1x1xf32>
    %455 = arith.cmpf olt, %433, %16 : vector<1x1x1xf32>
    %456 = arith.select %455, %433, %452 : vector<1x1x1xi1>, vector<1x1x1xf32>
    %457 = arith.cmpf olt, %424, %16 : vector<1x1x1xf32>
    %458 = arith.select %457, %409, %454 : vector<1x1x1xi1>, vector<1x1x1xf32>
    %459 = arith.cmpf olt, %424, %16 : vector<1x1x1xf32>
    %460 = arith.select %459, %424, %456 : vector<1x1x1xi1>, vector<1x1x1xf32>
    %c7_i32 = arith.constant 7 : i32
    %461 = arith.subf %458, %448 : vector<1x1x1xf32>
    %cst_152 = arith.constant 2.500000e-01 : f32
    %462 = vector.broadcast %cst_152 : f32 to vector<1x1x1xf32>
    %463 = arith.mulf %462, %461 : vector<1x1x1xf32>
    %464 = arith.addf %448, %463 : vector<1x1x1xf32>
    %cst_153 = arith.constant 5.000000e-01 : f32
    %465 = vector.broadcast %cst_153 : f32 to vector<1x1x1xf32>
    %466 = arith.mulf %465, %461 : vector<1x1x1xf32>
    %467 = arith.addf %448, %466 : vector<1x1x1xf32>
    %cst_154 = arith.constant 7.500000e-01 : f32
    %468 = vector.broadcast %cst_154 : f32 to vector<1x1x1xf32>
    %469 = arith.mulf %468, %461 : vector<1x1x1xf32>
    %470 = arith.addf %448, %469 : vector<1x1x1xf32>
    %471 = vector.broadcast %464 : vector<1x1x1xf32> to vector<1x2x128xf32>
    %472 = arith.cmpf ogt, %28, %471 : vector<1x2x128xf32>
    %cst_155 = arith.constant 1.000000e+00 : f32
    %cst_156 = arith.constant 0.000000e+00 : f32
    %473 = vector.broadcast %cst_155 : f32 to vector<1x2x128xf32>
    %474 = vector.broadcast %cst_156 : f32 to vector<1x2x128xf32>
    %475 = arith.select %472, %473, %474 : vector<1x2x128xi1>, vector<1x2x128xf32>
    %cst_157 = arith.constant dense<0.000000e+00> : vector<1x128xf32>
    %476 = vector.multi_reduction <add>, %475, %cst_157 [1] : vector<1x2x128xf32> to vector<1x128xf32>
    %477 = vector.shape_cast %476 : vector<1x128xf32> to vector<1x1x128xf32>
    %cst_158 = arith.constant dense<0.000000e+00> : vector<1x1xf32>
    %478 = vector.multi_reduction <add>, %477, %cst_158 [2] : vector<1x1x128xf32> to vector<1x1xf32>
    %479 = vector.shape_cast %478 : vector<1x1xf32> to vector<1x1x1xf32>
    %480 = vector.broadcast %467 : vector<1x1x1xf32> to vector<1x2x128xf32>
    %481 = arith.cmpf ogt, %28, %480 : vector<1x2x128xf32>
    %cst_159 = arith.constant 1.000000e+00 : f32
    %cst_160 = arith.constant 0.000000e+00 : f32
    %482 = vector.broadcast %cst_159 : f32 to vector<1x2x128xf32>
    %483 = vector.broadcast %cst_160 : f32 to vector<1x2x128xf32>
    %484 = arith.select %481, %482, %483 : vector<1x2x128xi1>, vector<1x2x128xf32>
    %cst_161 = arith.constant dense<0.000000e+00> : vector<1x128xf32>
    %485 = vector.multi_reduction <add>, %484, %cst_161 [1] : vector<1x2x128xf32> to vector<1x128xf32>
    %486 = vector.shape_cast %485 : vector<1x128xf32> to vector<1x1x128xf32>
    %cst_162 = arith.constant dense<0.000000e+00> : vector<1x1xf32>
    %487 = vector.multi_reduction <add>, %486, %cst_162 [2] : vector<1x1x128xf32> to vector<1x1xf32>
    %488 = vector.shape_cast %487 : vector<1x1xf32> to vector<1x1x1xf32>
    %489 = vector.broadcast %470 : vector<1x1x1xf32> to vector<1x2x128xf32>
    %490 = arith.cmpf ogt, %28, %489 : vector<1x2x128xf32>
    %cst_163 = arith.constant 1.000000e+00 : f32
    %cst_164 = arith.constant 0.000000e+00 : f32
    %491 = vector.broadcast %cst_163 : f32 to vector<1x2x128xf32>
    %492 = vector.broadcast %cst_164 : f32 to vector<1x2x128xf32>
    %493 = arith.select %490, %491, %492 : vector<1x2x128xi1>, vector<1x2x128xf32>
    %cst_165 = arith.constant dense<0.000000e+00> : vector<1x128xf32>
    %494 = vector.multi_reduction <add>, %493, %cst_165 [1] : vector<1x2x128xf32> to vector<1x128xf32>
    %495 = vector.shape_cast %494 : vector<1x128xf32> to vector<1x1x128xf32>
    %cst_166 = arith.constant dense<0.000000e+00> : vector<1x1xf32>
    %496 = vector.multi_reduction <add>, %495, %cst_166 [2] : vector<1x1x128xf32> to vector<1x1xf32>
    %497 = vector.shape_cast %496 : vector<1x1xf32> to vector<1x1x1xf32>
    %498 = arith.cmpf oge, %479, %16 : vector<1x1x1xf32>
    %499 = arith.select %498, %464, %448 : vector<1x1x1xi1>, vector<1x1x1xf32>
    %500 = arith.cmpf oge, %488, %16 : vector<1x1x1xf32>
    %501 = arith.select %500, %467, %499 : vector<1x1x1xi1>, vector<1x1x1xf32>
    %502 = arith.cmpf oge, %497, %16 : vector<1x1x1xf32>
    %503 = arith.select %502, %470, %501 : vector<1x1x1xi1>, vector<1x1x1xf32>
    %504 = arith.cmpf olt, %497, %16 : vector<1x1x1xf32>
    %505 = arith.select %504, %470, %458 : vector<1x1x1xi1>, vector<1x1x1xf32>
    %506 = arith.cmpf olt, %497, %16 : vector<1x1x1xf32>
    %507 = arith.select %506, %497, %460 : vector<1x1x1xi1>, vector<1x1x1xf32>
    %508 = arith.cmpf olt, %488, %16 : vector<1x1x1xf32>
    %509 = arith.select %508, %467, %505 : vector<1x1x1xi1>, vector<1x1x1xf32>
    %510 = arith.cmpf olt, %488, %16 : vector<1x1x1xf32>
    %511 = arith.select %510, %488, %507 : vector<1x1x1xi1>, vector<1x1x1xf32>
    %512 = arith.cmpf olt, %479, %16 : vector<1x1x1xf32>
    %513 = arith.select %512, %464, %509 : vector<1x1x1xi1>, vector<1x1x1xf32>
    %514 = arith.cmpf olt, %479, %16 : vector<1x1x1xf32>
    %515 = arith.select %514, %479, %511 : vector<1x1x1xi1>, vector<1x1x1xf32>
    %c8_i32 = arith.constant 8 : i32
    %516 = arith.subf %513, %503 : vector<1x1x1xf32>
    %cst_167 = arith.constant 2.500000e-01 : f32
    %517 = vector.broadcast %cst_167 : f32 to vector<1x1x1xf32>
    %518 = arith.mulf %517, %516 : vector<1x1x1xf32>
    %519 = arith.addf %503, %518 : vector<1x1x1xf32>
    %cst_168 = arith.constant 5.000000e-01 : f32
    %520 = vector.broadcast %cst_168 : f32 to vector<1x1x1xf32>
    %521 = arith.mulf %520, %516 : vector<1x1x1xf32>
    %522 = arith.addf %503, %521 : vector<1x1x1xf32>
    %cst_169 = arith.constant 7.500000e-01 : f32
    %523 = vector.broadcast %cst_169 : f32 to vector<1x1x1xf32>
    %524 = arith.mulf %523, %516 : vector<1x1x1xf32>
    %525 = arith.addf %503, %524 : vector<1x1x1xf32>
    %526 = vector.broadcast %519 : vector<1x1x1xf32> to vector<1x2x128xf32>
    %527 = arith.cmpf ogt, %28, %526 : vector<1x2x128xf32>
    %cst_170 = arith.constant 1.000000e+00 : f32
    %cst_171 = arith.constant 0.000000e+00 : f32
    %528 = vector.broadcast %cst_170 : f32 to vector<1x2x128xf32>
    %529 = vector.broadcast %cst_171 : f32 to vector<1x2x128xf32>
    %530 = arith.select %527, %528, %529 : vector<1x2x128xi1>, vector<1x2x128xf32>
    %cst_172 = arith.constant dense<0.000000e+00> : vector<1x128xf32>
    %531 = vector.multi_reduction <add>, %530, %cst_172 [1] : vector<1x2x128xf32> to vector<1x128xf32>
    %532 = vector.shape_cast %531 : vector<1x128xf32> to vector<1x1x128xf32>
    %cst_173 = arith.constant dense<0.000000e+00> : vector<1x1xf32>
    %533 = vector.multi_reduction <add>, %532, %cst_173 [2] : vector<1x1x128xf32> to vector<1x1xf32>
    %534 = vector.shape_cast %533 : vector<1x1xf32> to vector<1x1x1xf32>
    %535 = vector.broadcast %522 : vector<1x1x1xf32> to vector<1x2x128xf32>
    %536 = arith.cmpf ogt, %28, %535 : vector<1x2x128xf32>
    %cst_174 = arith.constant 1.000000e+00 : f32
    %cst_175 = arith.constant 0.000000e+00 : f32
    %537 = vector.broadcast %cst_174 : f32 to vector<1x2x128xf32>
    %538 = vector.broadcast %cst_175 : f32 to vector<1x2x128xf32>
    %539 = arith.select %536, %537, %538 : vector<1x2x128xi1>, vector<1x2x128xf32>
    %cst_176 = arith.constant dense<0.000000e+00> : vector<1x128xf32>
    %540 = vector.multi_reduction <add>, %539, %cst_176 [1] : vector<1x2x128xf32> to vector<1x128xf32>
    %541 = vector.shape_cast %540 : vector<1x128xf32> to vector<1x1x128xf32>
    %cst_177 = arith.constant dense<0.000000e+00> : vector<1x1xf32>
    %542 = vector.multi_reduction <add>, %541, %cst_177 [2] : vector<1x1x128xf32> to vector<1x1xf32>
    %543 = vector.shape_cast %542 : vector<1x1xf32> to vector<1x1x1xf32>
    %544 = vector.broadcast %525 : vector<1x1x1xf32> to vector<1x2x128xf32>
    %545 = arith.cmpf ogt, %28, %544 : vector<1x2x128xf32>
    %cst_178 = arith.constant 1.000000e+00 : f32
    %cst_179 = arith.constant 0.000000e+00 : f32
    %546 = vector.broadcast %cst_178 : f32 to vector<1x2x128xf32>
    %547 = vector.broadcast %cst_179 : f32 to vector<1x2x128xf32>
    %548 = arith.select %545, %546, %547 : vector<1x2x128xi1>, vector<1x2x128xf32>
    %cst_180 = arith.constant dense<0.000000e+00> : vector<1x128xf32>
    %549 = vector.multi_reduction <add>, %548, %cst_180 [1] : vector<1x2x128xf32> to vector<1x128xf32>
    %550 = vector.shape_cast %549 : vector<1x128xf32> to vector<1x1x128xf32>
    %cst_181 = arith.constant dense<0.000000e+00> : vector<1x1xf32>
    %551 = vector.multi_reduction <add>, %550, %cst_181 [2] : vector<1x1x128xf32> to vector<1x1xf32>
    %552 = vector.shape_cast %551 : vector<1x1xf32> to vector<1x1x1xf32>
    %553 = arith.cmpf oge, %534, %16 : vector<1x1x1xf32>
    %554 = arith.select %553, %519, %503 : vector<1x1x1xi1>, vector<1x1x1xf32>
    %555 = arith.cmpf oge, %543, %16 : vector<1x1x1xf32>
    %556 = arith.select %555, %522, %554 : vector<1x1x1xi1>, vector<1x1x1xf32>
    %557 = arith.cmpf oge, %552, %16 : vector<1x1x1xf32>
    %558 = arith.select %557, %525, %556 : vector<1x1x1xi1>, vector<1x1x1xf32>
    %559 = arith.cmpf olt, %552, %16 : vector<1x1x1xf32>
    %560 = arith.select %559, %525, %513 : vector<1x1x1xi1>, vector<1x1x1xf32>
    %561 = arith.cmpf olt, %552, %16 : vector<1x1x1xf32>
    %562 = arith.select %561, %552, %515 : vector<1x1x1xi1>, vector<1x1x1xf32>
    %563 = arith.cmpf olt, %543, %16 : vector<1x1x1xf32>
    %564 = arith.select %563, %522, %560 : vector<1x1x1xi1>, vector<1x1x1xf32>
    %565 = arith.cmpf olt, %543, %16 : vector<1x1x1xf32>
    %566 = arith.select %565, %543, %562 : vector<1x1x1xi1>, vector<1x1x1xf32>
    %567 = arith.cmpf olt, %534, %16 : vector<1x1x1xf32>
    %568 = arith.select %567, %519, %564 : vector<1x1x1xi1>, vector<1x1x1xf32>
    %569 = arith.cmpf olt, %534, %16 : vector<1x1x1xf32>
    %570 = arith.select %569, %534, %566 : vector<1x1x1xi1>, vector<1x1x1xf32>
    %c9_i32 = arith.constant 9 : i32
    %571 = arith.subf %568, %558 : vector<1x1x1xf32>
    %cst_182 = arith.constant 2.500000e-01 : f32
    %572 = vector.broadcast %cst_182 : f32 to vector<1x1x1xf32>
    %573 = arith.mulf %572, %571 : vector<1x1x1xf32>
    %574 = arith.addf %558, %573 : vector<1x1x1xf32>
    %cst_183 = arith.constant 5.000000e-01 : f32
    %575 = vector.broadcast %cst_183 : f32 to vector<1x1x1xf32>
    %576 = arith.mulf %575, %571 : vector<1x1x1xf32>
    %577 = arith.addf %558, %576 : vector<1x1x1xf32>
    %cst_184 = arith.constant 7.500000e-01 : f32
    %578 = vector.broadcast %cst_184 : f32 to vector<1x1x1xf32>
    %579 = arith.mulf %578, %571 : vector<1x1x1xf32>
    %580 = arith.addf %558, %579 : vector<1x1x1xf32>
    %581 = vector.broadcast %574 : vector<1x1x1xf32> to vector<1x2x128xf32>
    %582 = arith.cmpf ogt, %28, %581 : vector<1x2x128xf32>
    %cst_185 = arith.constant 1.000000e+00 : f32
    %cst_186 = arith.constant 0.000000e+00 : f32
    %583 = vector.broadcast %cst_185 : f32 to vector<1x2x128xf32>
    %584 = vector.broadcast %cst_186 : f32 to vector<1x2x128xf32>
    %585 = arith.select %582, %583, %584 : vector<1x2x128xi1>, vector<1x2x128xf32>
    %cst_187 = arith.constant dense<0.000000e+00> : vector<1x128xf32>
    %586 = vector.multi_reduction <add>, %585, %cst_187 [1] : vector<1x2x128xf32> to vector<1x128xf32>
    %587 = vector.shape_cast %586 : vector<1x128xf32> to vector<1x1x128xf32>
    %cst_188 = arith.constant dense<0.000000e+00> : vector<1x1xf32>
    %588 = vector.multi_reduction <add>, %587, %cst_188 [2] : vector<1x1x128xf32> to vector<1x1xf32>
    %589 = vector.shape_cast %588 : vector<1x1xf32> to vector<1x1x1xf32>
    %590 = vector.broadcast %577 : vector<1x1x1xf32> to vector<1x2x128xf32>
    %591 = arith.cmpf ogt, %28, %590 : vector<1x2x128xf32>
    %cst_189 = arith.constant 1.000000e+00 : f32
    %cst_190 = arith.constant 0.000000e+00 : f32
    %592 = vector.broadcast %cst_189 : f32 to vector<1x2x128xf32>
    %593 = vector.broadcast %cst_190 : f32 to vector<1x2x128xf32>
    %594 = arith.select %591, %592, %593 : vector<1x2x128xi1>, vector<1x2x128xf32>
    %cst_191 = arith.constant dense<0.000000e+00> : vector<1x128xf32>
    %595 = vector.multi_reduction <add>, %594, %cst_191 [1] : vector<1x2x128xf32> to vector<1x128xf32>
    %596 = vector.shape_cast %595 : vector<1x128xf32> to vector<1x1x128xf32>
    %cst_192 = arith.constant dense<0.000000e+00> : vector<1x1xf32>
    %597 = vector.multi_reduction <add>, %596, %cst_192 [2] : vector<1x1x128xf32> to vector<1x1xf32>
    %598 = vector.shape_cast %597 : vector<1x1xf32> to vector<1x1x1xf32>
    %599 = vector.broadcast %580 : vector<1x1x1xf32> to vector<1x2x128xf32>
    %600 = arith.cmpf ogt, %28, %599 : vector<1x2x128xf32>
    %cst_193 = arith.constant 1.000000e+00 : f32
    %cst_194 = arith.constant 0.000000e+00 : f32
    %601 = vector.broadcast %cst_193 : f32 to vector<1x2x128xf32>
    %602 = vector.broadcast %cst_194 : f32 to vector<1x2x128xf32>
    %603 = arith.select %600, %601, %602 : vector<1x2x128xi1>, vector<1x2x128xf32>
    %cst_195 = arith.constant dense<0.000000e+00> : vector<1x128xf32>
    %604 = vector.multi_reduction <add>, %603, %cst_195 [1] : vector<1x2x128xf32> to vector<1x128xf32>
    %605 = vector.shape_cast %604 : vector<1x128xf32> to vector<1x1x128xf32>
    %cst_196 = arith.constant dense<0.000000e+00> : vector<1x1xf32>
    %606 = vector.multi_reduction <add>, %605, %cst_196 [2] : vector<1x1x128xf32> to vector<1x1xf32>
    %607 = vector.shape_cast %606 : vector<1x1xf32> to vector<1x1x1xf32>
    %608 = arith.cmpf oge, %589, %16 : vector<1x1x1xf32>
    %609 = arith.select %608, %574, %558 : vector<1x1x1xi1>, vector<1x1x1xf32>
    %610 = arith.cmpf oge, %598, %16 : vector<1x1x1xf32>
    %611 = arith.select %610, %577, %609 : vector<1x1x1xi1>, vector<1x1x1xf32>
    %612 = arith.cmpf oge, %607, %16 : vector<1x1x1xf32>
    %613 = arith.select %612, %580, %611 : vector<1x1x1xi1>, vector<1x1x1xf32>
    %614 = arith.cmpf olt, %607, %16 : vector<1x1x1xf32>
    %615 = arith.select %614, %580, %568 : vector<1x1x1xi1>, vector<1x1x1xf32>
    %616 = arith.cmpf olt, %607, %16 : vector<1x1x1xf32>
    %617 = arith.select %616, %607, %570 : vector<1x1x1xi1>, vector<1x1x1xf32>
    %618 = arith.cmpf olt, %598, %16 : vector<1x1x1xf32>
    %619 = arith.select %618, %577, %615 : vector<1x1x1xi1>, vector<1x1x1xf32>
    %620 = arith.cmpf olt, %598, %16 : vector<1x1x1xf32>
    %621 = arith.select %620, %598, %617 : vector<1x1x1xi1>, vector<1x1x1xf32>
    %622 = arith.cmpf olt, %589, %16 : vector<1x1x1xf32>
    %623 = arith.select %622, %574, %619 : vector<1x1x1xi1>, vector<1x1x1xf32>
    %624 = arith.cmpf olt, %589, %16 : vector<1x1x1xf32>
    %625 = arith.select %624, %589, %621 : vector<1x1x1xi1>, vector<1x1x1xf32>
    %c10_i32 = arith.constant 10 : i32
    %626 = arith.subf %623, %613 : vector<1x1x1xf32>
    %cst_197 = arith.constant 2.500000e-01 : f32
    %627 = vector.broadcast %cst_197 : f32 to vector<1x1x1xf32>
    %628 = arith.mulf %627, %626 : vector<1x1x1xf32>
    %629 = arith.addf %613, %628 : vector<1x1x1xf32>
    %cst_198 = arith.constant 5.000000e-01 : f32
    %630 = vector.broadcast %cst_198 : f32 to vector<1x1x1xf32>
    %631 = arith.mulf %630, %626 : vector<1x1x1xf32>
    %632 = arith.addf %613, %631 : vector<1x1x1xf32>
    %cst_199 = arith.constant 7.500000e-01 : f32
    %633 = vector.broadcast %cst_199 : f32 to vector<1x1x1xf32>
    %634 = arith.mulf %633, %626 : vector<1x1x1xf32>
    %635 = arith.addf %613, %634 : vector<1x1x1xf32>
    %636 = vector.broadcast %629 : vector<1x1x1xf32> to vector<1x2x128xf32>
    %637 = arith.cmpf ogt, %28, %636 : vector<1x2x128xf32>
    %cst_200 = arith.constant 1.000000e+00 : f32
    %cst_201 = arith.constant 0.000000e+00 : f32
    %638 = vector.broadcast %cst_200 : f32 to vector<1x2x128xf32>
    %639 = vector.broadcast %cst_201 : f32 to vector<1x2x128xf32>
    %640 = arith.select %637, %638, %639 : vector<1x2x128xi1>, vector<1x2x128xf32>
    %cst_202 = arith.constant dense<0.000000e+00> : vector<1x128xf32>
    %641 = vector.multi_reduction <add>, %640, %cst_202 [1] : vector<1x2x128xf32> to vector<1x128xf32>
    %642 = vector.shape_cast %641 : vector<1x128xf32> to vector<1x1x128xf32>
    %cst_203 = arith.constant dense<0.000000e+00> : vector<1x1xf32>
    %643 = vector.multi_reduction <add>, %642, %cst_203 [2] : vector<1x1x128xf32> to vector<1x1xf32>
    %644 = vector.shape_cast %643 : vector<1x1xf32> to vector<1x1x1xf32>
    %645 = vector.broadcast %632 : vector<1x1x1xf32> to vector<1x2x128xf32>
    %646 = arith.cmpf ogt, %28, %645 : vector<1x2x128xf32>
    %cst_204 = arith.constant 1.000000e+00 : f32
    %cst_205 = arith.constant 0.000000e+00 : f32
    %647 = vector.broadcast %cst_204 : f32 to vector<1x2x128xf32>
    %648 = vector.broadcast %cst_205 : f32 to vector<1x2x128xf32>
    %649 = arith.select %646, %647, %648 : vector<1x2x128xi1>, vector<1x2x128xf32>
    %cst_206 = arith.constant dense<0.000000e+00> : vector<1x128xf32>
    %650 = vector.multi_reduction <add>, %649, %cst_206 [1] : vector<1x2x128xf32> to vector<1x128xf32>
    %651 = vector.shape_cast %650 : vector<1x128xf32> to vector<1x1x128xf32>
    %cst_207 = arith.constant dense<0.000000e+00> : vector<1x1xf32>
    %652 = vector.multi_reduction <add>, %651, %cst_207 [2] : vector<1x1x128xf32> to vector<1x1xf32>
    %653 = vector.shape_cast %652 : vector<1x1xf32> to vector<1x1x1xf32>
    %654 = vector.broadcast %635 : vector<1x1x1xf32> to vector<1x2x128xf32>
    %655 = arith.cmpf ogt, %28, %654 : vector<1x2x128xf32>
    %cst_208 = arith.constant 1.000000e+00 : f32
    %cst_209 = arith.constant 0.000000e+00 : f32
    %656 = vector.broadcast %cst_208 : f32 to vector<1x2x128xf32>
    %657 = vector.broadcast %cst_209 : f32 to vector<1x2x128xf32>
    %658 = arith.select %655, %656, %657 : vector<1x2x128xi1>, vector<1x2x128xf32>
    %cst_210 = arith.constant dense<0.000000e+00> : vector<1x128xf32>
    %659 = vector.multi_reduction <add>, %658, %cst_210 [1] : vector<1x2x128xf32> to vector<1x128xf32>
    %660 = vector.shape_cast %659 : vector<1x128xf32> to vector<1x1x128xf32>
    %cst_211 = arith.constant dense<0.000000e+00> : vector<1x1xf32>
    %661 = vector.multi_reduction <add>, %660, %cst_211 [2] : vector<1x1x128xf32> to vector<1x1xf32>
    %662 = vector.shape_cast %661 : vector<1x1xf32> to vector<1x1x1xf32>
    %663 = arith.cmpf oge, %644, %16 : vector<1x1x1xf32>
    %664 = arith.select %663, %629, %613 : vector<1x1x1xi1>, vector<1x1x1xf32>
    %665 = arith.cmpf oge, %653, %16 : vector<1x1x1xf32>
    %666 = arith.select %665, %632, %664 : vector<1x1x1xi1>, vector<1x1x1xf32>
    %667 = arith.cmpf oge, %662, %16 : vector<1x1x1xf32>
    %668 = arith.select %667, %635, %666 : vector<1x1x1xi1>, vector<1x1x1xf32>
    %669 = arith.cmpf olt, %662, %16 : vector<1x1x1xf32>
    %670 = arith.select %669, %635, %623 : vector<1x1x1xi1>, vector<1x1x1xf32>
    %671 = arith.cmpf olt, %662, %16 : vector<1x1x1xf32>
    %672 = arith.select %671, %662, %625 : vector<1x1x1xi1>, vector<1x1x1xf32>
    %673 = arith.cmpf olt, %653, %16 : vector<1x1x1xf32>
    %674 = arith.select %673, %632, %670 : vector<1x1x1xi1>, vector<1x1x1xf32>
    %675 = arith.cmpf olt, %653, %16 : vector<1x1x1xf32>
    %676 = arith.select %675, %653, %672 : vector<1x1x1xi1>, vector<1x1x1xf32>
    %677 = arith.cmpf olt, %644, %16 : vector<1x1x1xf32>
    %678 = arith.select %677, %629, %674 : vector<1x1x1xi1>, vector<1x1x1xf32>
    %679 = arith.cmpf olt, %644, %16 : vector<1x1x1xf32>
    %680 = arith.select %679, %644, %676 : vector<1x1x1xi1>, vector<1x1x1xf32>
    %c11_i32 = arith.constant 11 : i32
    %681 = arith.subf %678, %668 : vector<1x1x1xf32>
    %cst_212 = arith.constant 2.500000e-01 : f32
    %682 = vector.broadcast %cst_212 : f32 to vector<1x1x1xf32>
    %683 = arith.mulf %682, %681 : vector<1x1x1xf32>
    %684 = arith.addf %668, %683 : vector<1x1x1xf32>
    %cst_213 = arith.constant 5.000000e-01 : f32
    %685 = vector.broadcast %cst_213 : f32 to vector<1x1x1xf32>
    %686 = arith.mulf %685, %681 : vector<1x1x1xf32>
    %687 = arith.addf %668, %686 : vector<1x1x1xf32>
    %cst_214 = arith.constant 7.500000e-01 : f32
    %688 = vector.broadcast %cst_214 : f32 to vector<1x1x1xf32>
    %689 = arith.mulf %688, %681 : vector<1x1x1xf32>
    %690 = arith.addf %668, %689 : vector<1x1x1xf32>
    %691 = vector.broadcast %684 : vector<1x1x1xf32> to vector<1x2x128xf32>
    %692 = arith.cmpf ogt, %28, %691 : vector<1x2x128xf32>
    %cst_215 = arith.constant 1.000000e+00 : f32
    %cst_216 = arith.constant 0.000000e+00 : f32
    %693 = vector.broadcast %cst_215 : f32 to vector<1x2x128xf32>
    %694 = vector.broadcast %cst_216 : f32 to vector<1x2x128xf32>
    %695 = arith.select %692, %693, %694 : vector<1x2x128xi1>, vector<1x2x128xf32>
    %cst_217 = arith.constant dense<0.000000e+00> : vector<1x128xf32>
    %696 = vector.multi_reduction <add>, %695, %cst_217 [1] : vector<1x2x128xf32> to vector<1x128xf32>
    %697 = vector.shape_cast %696 : vector<1x128xf32> to vector<1x1x128xf32>
    %cst_218 = arith.constant dense<0.000000e+00> : vector<1x1xf32>
    %698 = vector.multi_reduction <add>, %697, %cst_218 [2] : vector<1x1x128xf32> to vector<1x1xf32>
    %699 = vector.shape_cast %698 : vector<1x1xf32> to vector<1x1x1xf32>
    %700 = vector.broadcast %687 : vector<1x1x1xf32> to vector<1x2x128xf32>
    %701 = arith.cmpf ogt, %28, %700 : vector<1x2x128xf32>
    %cst_219 = arith.constant 1.000000e+00 : f32
    %cst_220 = arith.constant 0.000000e+00 : f32
    %702 = vector.broadcast %cst_219 : f32 to vector<1x2x128xf32>
    %703 = vector.broadcast %cst_220 : f32 to vector<1x2x128xf32>
    %704 = arith.select %701, %702, %703 : vector<1x2x128xi1>, vector<1x2x128xf32>
    %cst_221 = arith.constant dense<0.000000e+00> : vector<1x128xf32>
    %705 = vector.multi_reduction <add>, %704, %cst_221 [1] : vector<1x2x128xf32> to vector<1x128xf32>
    %706 = vector.shape_cast %705 : vector<1x128xf32> to vector<1x1x128xf32>
    %cst_222 = arith.constant dense<0.000000e+00> : vector<1x1xf32>
    %707 = vector.multi_reduction <add>, %706, %cst_222 [2] : vector<1x1x128xf32> to vector<1x1xf32>
    %708 = vector.shape_cast %707 : vector<1x1xf32> to vector<1x1x1xf32>
    %709 = vector.broadcast %690 : vector<1x1x1xf32> to vector<1x2x128xf32>
    %710 = arith.cmpf ogt, %28, %709 : vector<1x2x128xf32>
    %cst_223 = arith.constant 1.000000e+00 : f32
    %cst_224 = arith.constant 0.000000e+00 : f32
    %711 = vector.broadcast %cst_223 : f32 to vector<1x2x128xf32>
    %712 = vector.broadcast %cst_224 : f32 to vector<1x2x128xf32>
    %713 = arith.select %710, %711, %712 : vector<1x2x128xi1>, vector<1x2x128xf32>
    %cst_225 = arith.constant dense<0.000000e+00> : vector<1x128xf32>
    %714 = vector.multi_reduction <add>, %713, %cst_225 [1] : vector<1x2x128xf32> to vector<1x128xf32>
    %715 = vector.shape_cast %714 : vector<1x128xf32> to vector<1x1x128xf32>
    %cst_226 = arith.constant dense<0.000000e+00> : vector<1x1xf32>
    %716 = vector.multi_reduction <add>, %715, %cst_226 [2] : vector<1x1x128xf32> to vector<1x1xf32>
    %717 = vector.shape_cast %716 : vector<1x1xf32> to vector<1x1x1xf32>
    %718 = arith.cmpf oge, %699, %16 : vector<1x1x1xf32>
    %719 = arith.select %718, %684, %668 : vector<1x1x1xi1>, vector<1x1x1xf32>
    %720 = arith.cmpf oge, %708, %16 : vector<1x1x1xf32>
    %721 = arith.select %720, %687, %719 : vector<1x1x1xi1>, vector<1x1x1xf32>
    %722 = arith.cmpf oge, %717, %16 : vector<1x1x1xf32>
    %723 = arith.select %722, %690, %721 : vector<1x1x1xi1>, vector<1x1x1xf32>
    %724 = arith.cmpf olt, %717, %16 : vector<1x1x1xf32>
    %725 = arith.select %724, %690, %678 : vector<1x1x1xi1>, vector<1x1x1xf32>
    %726 = arith.cmpf olt, %717, %16 : vector<1x1x1xf32>
    %727 = arith.select %726, %717, %680 : vector<1x1x1xi1>, vector<1x1x1xf32>
    %728 = arith.cmpf olt, %708, %16 : vector<1x1x1xf32>
    %729 = arith.select %728, %687, %725 : vector<1x1x1xi1>, vector<1x1x1xf32>
    %730 = arith.cmpf olt, %708, %16 : vector<1x1x1xf32>
    %731 = arith.select %730, %708, %727 : vector<1x1x1xi1>, vector<1x1x1xf32>
    %732 = arith.cmpf olt, %699, %16 : vector<1x1x1xf32>
    %733 = arith.select %732, %684, %729 : vector<1x1x1xi1>, vector<1x1x1xf32>
    %734 = arith.cmpf olt, %699, %16 : vector<1x1x1xf32>
    %735 = arith.select %734, %699, %731 : vector<1x1x1xi1>, vector<1x1x1xf32>
    %c12_i32 = arith.constant 12 : i32
    %736 = arith.subf %733, %723 : vector<1x1x1xf32>
    %cst_227 = arith.constant 2.500000e-01 : f32
    %737 = vector.broadcast %cst_227 : f32 to vector<1x1x1xf32>
    %738 = arith.mulf %737, %736 : vector<1x1x1xf32>
    %739 = arith.addf %723, %738 : vector<1x1x1xf32>
    %cst_228 = arith.constant 5.000000e-01 : f32
    %740 = vector.broadcast %cst_228 : f32 to vector<1x1x1xf32>
    %741 = arith.mulf %740, %736 : vector<1x1x1xf32>
    %742 = arith.addf %723, %741 : vector<1x1x1xf32>
    %cst_229 = arith.constant 7.500000e-01 : f32
    %743 = vector.broadcast %cst_229 : f32 to vector<1x1x1xf32>
    %744 = arith.mulf %743, %736 : vector<1x1x1xf32>
    %745 = arith.addf %723, %744 : vector<1x1x1xf32>
    %746 = vector.broadcast %739 : vector<1x1x1xf32> to vector<1x2x128xf32>
    %747 = arith.cmpf ogt, %28, %746 : vector<1x2x128xf32>
    %cst_230 = arith.constant 1.000000e+00 : f32
    %cst_231 = arith.constant 0.000000e+00 : f32
    %748 = vector.broadcast %cst_230 : f32 to vector<1x2x128xf32>
    %749 = vector.broadcast %cst_231 : f32 to vector<1x2x128xf32>
    %750 = arith.select %747, %748, %749 : vector<1x2x128xi1>, vector<1x2x128xf32>
    %cst_232 = arith.constant dense<0.000000e+00> : vector<1x128xf32>
    %751 = vector.multi_reduction <add>, %750, %cst_232 [1] : vector<1x2x128xf32> to vector<1x128xf32>
    %752 = vector.shape_cast %751 : vector<1x128xf32> to vector<1x1x128xf32>
    %cst_233 = arith.constant dense<0.000000e+00> : vector<1x1xf32>
    %753 = vector.multi_reduction <add>, %752, %cst_233 [2] : vector<1x1x128xf32> to vector<1x1xf32>
    %754 = vector.shape_cast %753 : vector<1x1xf32> to vector<1x1x1xf32>
    %755 = vector.broadcast %742 : vector<1x1x1xf32> to vector<1x2x128xf32>
    %756 = arith.cmpf ogt, %28, %755 : vector<1x2x128xf32>
    %cst_234 = arith.constant 1.000000e+00 : f32
    %cst_235 = arith.constant 0.000000e+00 : f32
    %757 = vector.broadcast %cst_234 : f32 to vector<1x2x128xf32>
    %758 = vector.broadcast %cst_235 : f32 to vector<1x2x128xf32>
    %759 = arith.select %756, %757, %758 : vector<1x2x128xi1>, vector<1x2x128xf32>
    %cst_236 = arith.constant dense<0.000000e+00> : vector<1x128xf32>
    %760 = vector.multi_reduction <add>, %759, %cst_236 [1] : vector<1x2x128xf32> to vector<1x128xf32>
    %761 = vector.shape_cast %760 : vector<1x128xf32> to vector<1x1x128xf32>
    %cst_237 = arith.constant dense<0.000000e+00> : vector<1x1xf32>
    %762 = vector.multi_reduction <add>, %761, %cst_237 [2] : vector<1x1x128xf32> to vector<1x1xf32>
    %763 = vector.shape_cast %762 : vector<1x1xf32> to vector<1x1x1xf32>
    %764 = vector.broadcast %745 : vector<1x1x1xf32> to vector<1x2x128xf32>
    %765 = arith.cmpf ogt, %28, %764 : vector<1x2x128xf32>
    %cst_238 = arith.constant 1.000000e+00 : f32
    %cst_239 = arith.constant 0.000000e+00 : f32
    %766 = vector.broadcast %cst_238 : f32 to vector<1x2x128xf32>
    %767 = vector.broadcast %cst_239 : f32 to vector<1x2x128xf32>
    %768 = arith.select %765, %766, %767 : vector<1x2x128xi1>, vector<1x2x128xf32>
    %cst_240 = arith.constant dense<0.000000e+00> : vector<1x128xf32>
    %769 = vector.multi_reduction <add>, %768, %cst_240 [1] : vector<1x2x128xf32> to vector<1x128xf32>
    %770 = vector.shape_cast %769 : vector<1x128xf32> to vector<1x1x128xf32>
    %cst_241 = arith.constant dense<0.000000e+00> : vector<1x1xf32>
    %771 = vector.multi_reduction <add>, %770, %cst_241 [2] : vector<1x1x128xf32> to vector<1x1xf32>
    %772 = vector.shape_cast %771 : vector<1x1xf32> to vector<1x1x1xf32>
    %773 = arith.cmpf oge, %754, %16 : vector<1x1x1xf32>
    %774 = arith.select %773, %739, %723 : vector<1x1x1xi1>, vector<1x1x1xf32>
    %775 = arith.cmpf oge, %763, %16 : vector<1x1x1xf32>
    %776 = arith.select %775, %742, %774 : vector<1x1x1xi1>, vector<1x1x1xf32>
    %777 = arith.cmpf oge, %772, %16 : vector<1x1x1xf32>
    %778 = arith.select %777, %745, %776 : vector<1x1x1xi1>, vector<1x1x1xf32>
    %779 = arith.cmpf olt, %772, %16 : vector<1x1x1xf32>
    %780 = arith.select %779, %745, %733 : vector<1x1x1xi1>, vector<1x1x1xf32>
    %781 = arith.cmpf olt, %772, %16 : vector<1x1x1xf32>
    %782 = arith.select %781, %772, %735 : vector<1x1x1xi1>, vector<1x1x1xf32>
    %783 = arith.cmpf olt, %763, %16 : vector<1x1x1xf32>
    %784 = arith.select %783, %742, %780 : vector<1x1x1xi1>, vector<1x1x1xf32>
    %785 = arith.cmpf olt, %763, %16 : vector<1x1x1xf32>
    %786 = arith.select %785, %763, %782 : vector<1x1x1xi1>, vector<1x1x1xf32>
    %787 = arith.cmpf olt, %754, %16 : vector<1x1x1xf32>
    %788 = arith.select %787, %739, %784 : vector<1x1x1xi1>, vector<1x1x1xf32>
    %789 = arith.cmpf olt, %754, %16 : vector<1x1x1xf32>
    %790 = arith.select %789, %754, %786 : vector<1x1x1xi1>, vector<1x1x1xf32>
    %c13_i32 = arith.constant 13 : i32
    %791 = arith.subf %788, %778 : vector<1x1x1xf32>
    %cst_242 = arith.constant 2.500000e-01 : f32
    %792 = vector.broadcast %cst_242 : f32 to vector<1x1x1xf32>
    %793 = arith.mulf %792, %791 : vector<1x1x1xf32>
    %794 = arith.addf %778, %793 : vector<1x1x1xf32>
    %cst_243 = arith.constant 5.000000e-01 : f32
    %795 = vector.broadcast %cst_243 : f32 to vector<1x1x1xf32>
    %796 = arith.mulf %795, %791 : vector<1x1x1xf32>
    %797 = arith.addf %778, %796 : vector<1x1x1xf32>
    %cst_244 = arith.constant 7.500000e-01 : f32
    %798 = vector.broadcast %cst_244 : f32 to vector<1x1x1xf32>
    %799 = arith.mulf %798, %791 : vector<1x1x1xf32>
    %800 = arith.addf %778, %799 : vector<1x1x1xf32>
    %801 = vector.broadcast %794 : vector<1x1x1xf32> to vector<1x2x128xf32>
    %802 = arith.cmpf ogt, %28, %801 : vector<1x2x128xf32>
    %cst_245 = arith.constant 1.000000e+00 : f32
    %cst_246 = arith.constant 0.000000e+00 : f32
    %803 = vector.broadcast %cst_245 : f32 to vector<1x2x128xf32>
    %804 = vector.broadcast %cst_246 : f32 to vector<1x2x128xf32>
    %805 = arith.select %802, %803, %804 : vector<1x2x128xi1>, vector<1x2x128xf32>
    %cst_247 = arith.constant dense<0.000000e+00> : vector<1x128xf32>
    %806 = vector.multi_reduction <add>, %805, %cst_247 [1] : vector<1x2x128xf32> to vector<1x128xf32>
    %807 = vector.shape_cast %806 : vector<1x128xf32> to vector<1x1x128xf32>
    %cst_248 = arith.constant dense<0.000000e+00> : vector<1x1xf32>
    %808 = vector.multi_reduction <add>, %807, %cst_248 [2] : vector<1x1x128xf32> to vector<1x1xf32>
    %809 = vector.shape_cast %808 : vector<1x1xf32> to vector<1x1x1xf32>
    %810 = vector.broadcast %797 : vector<1x1x1xf32> to vector<1x2x128xf32>
    %811 = arith.cmpf ogt, %28, %810 : vector<1x2x128xf32>
    %cst_249 = arith.constant 1.000000e+00 : f32
    %cst_250 = arith.constant 0.000000e+00 : f32
    %812 = vector.broadcast %cst_249 : f32 to vector<1x2x128xf32>
    %813 = vector.broadcast %cst_250 : f32 to vector<1x2x128xf32>
    %814 = arith.select %811, %812, %813 : vector<1x2x128xi1>, vector<1x2x128xf32>
    %cst_251 = arith.constant dense<0.000000e+00> : vector<1x128xf32>
    %815 = vector.multi_reduction <add>, %814, %cst_251 [1] : vector<1x2x128xf32> to vector<1x128xf32>
    %816 = vector.shape_cast %815 : vector<1x128xf32> to vector<1x1x128xf32>
    %cst_252 = arith.constant dense<0.000000e+00> : vector<1x1xf32>
    %817 = vector.multi_reduction <add>, %816, %cst_252 [2] : vector<1x1x128xf32> to vector<1x1xf32>
    %818 = vector.shape_cast %817 : vector<1x1xf32> to vector<1x1x1xf32>
    %819 = vector.broadcast %800 : vector<1x1x1xf32> to vector<1x2x128xf32>
    %820 = arith.cmpf ogt, %28, %819 : vector<1x2x128xf32>
    %cst_253 = arith.constant 1.000000e+00 : f32
    %cst_254 = arith.constant 0.000000e+00 : f32
    %821 = vector.broadcast %cst_253 : f32 to vector<1x2x128xf32>
    %822 = vector.broadcast %cst_254 : f32 to vector<1x2x128xf32>
    %823 = arith.select %820, %821, %822 : vector<1x2x128xi1>, vector<1x2x128xf32>
    %cst_255 = arith.constant dense<0.000000e+00> : vector<1x128xf32>
    %824 = vector.multi_reduction <add>, %823, %cst_255 [1] : vector<1x2x128xf32> to vector<1x128xf32>
    %825 = vector.shape_cast %824 : vector<1x128xf32> to vector<1x1x128xf32>
    %cst_256 = arith.constant dense<0.000000e+00> : vector<1x1xf32>
    %826 = vector.multi_reduction <add>, %825, %cst_256 [2] : vector<1x1x128xf32> to vector<1x1xf32>
    %827 = vector.shape_cast %826 : vector<1x1xf32> to vector<1x1x1xf32>
    %828 = arith.cmpf oge, %809, %16 : vector<1x1x1xf32>
    %829 = arith.select %828, %794, %778 : vector<1x1x1xi1>, vector<1x1x1xf32>
    %830 = arith.cmpf oge, %818, %16 : vector<1x1x1xf32>
    %831 = arith.select %830, %797, %829 : vector<1x1x1xi1>, vector<1x1x1xf32>
    %832 = arith.cmpf oge, %827, %16 : vector<1x1x1xf32>
    %833 = arith.select %832, %800, %831 : vector<1x1x1xi1>, vector<1x1x1xf32>
    %834 = arith.cmpf olt, %827, %16 : vector<1x1x1xf32>
    %835 = arith.select %834, %800, %788 : vector<1x1x1xi1>, vector<1x1x1xf32>
    %836 = arith.cmpf olt, %827, %16 : vector<1x1x1xf32>
    %837 = arith.select %836, %827, %790 : vector<1x1x1xi1>, vector<1x1x1xf32>
    %838 = arith.cmpf olt, %818, %16 : vector<1x1x1xf32>
    %839 = arith.select %838, %797, %835 : vector<1x1x1xi1>, vector<1x1x1xf32>
    %840 = arith.cmpf olt, %818, %16 : vector<1x1x1xf32>
    %841 = arith.select %840, %818, %837 : vector<1x1x1xi1>, vector<1x1x1xf32>
    %842 = arith.cmpf olt, %809, %16 : vector<1x1x1xf32>
    %843 = arith.select %842, %794, %839 : vector<1x1x1xi1>, vector<1x1x1xf32>
    %844 = arith.cmpf olt, %809, %16 : vector<1x1x1xf32>
    %845 = arith.select %844, %809, %841 : vector<1x1x1xi1>, vector<1x1x1xf32>
    %c14_i32 = arith.constant 14 : i32
    %846 = arith.subf %843, %833 : vector<1x1x1xf32>
    %cst_257 = arith.constant 2.500000e-01 : f32
    %847 = vector.broadcast %cst_257 : f32 to vector<1x1x1xf32>
    %848 = arith.mulf %847, %846 : vector<1x1x1xf32>
    %849 = arith.addf %833, %848 : vector<1x1x1xf32>
    %cst_258 = arith.constant 5.000000e-01 : f32
    %850 = vector.broadcast %cst_258 : f32 to vector<1x1x1xf32>
    %851 = arith.mulf %850, %846 : vector<1x1x1xf32>
    %852 = arith.addf %833, %851 : vector<1x1x1xf32>
    %cst_259 = arith.constant 7.500000e-01 : f32
    %853 = vector.broadcast %cst_259 : f32 to vector<1x1x1xf32>
    %854 = arith.mulf %853, %846 : vector<1x1x1xf32>
    %855 = arith.addf %833, %854 : vector<1x1x1xf32>
    %856 = vector.broadcast %849 : vector<1x1x1xf32> to vector<1x2x128xf32>
    %857 = arith.cmpf ogt, %28, %856 : vector<1x2x128xf32>
    %cst_260 = arith.constant 1.000000e+00 : f32
    %cst_261 = arith.constant 0.000000e+00 : f32
    %858 = vector.broadcast %cst_260 : f32 to vector<1x2x128xf32>
    %859 = vector.broadcast %cst_261 : f32 to vector<1x2x128xf32>
    %860 = arith.select %857, %858, %859 : vector<1x2x128xi1>, vector<1x2x128xf32>
    %cst_262 = arith.constant dense<0.000000e+00> : vector<1x128xf32>
    %861 = vector.multi_reduction <add>, %860, %cst_262 [1] : vector<1x2x128xf32> to vector<1x128xf32>
    %862 = vector.shape_cast %861 : vector<1x128xf32> to vector<1x1x128xf32>
    %cst_263 = arith.constant dense<0.000000e+00> : vector<1x1xf32>
    %863 = vector.multi_reduction <add>, %862, %cst_263 [2] : vector<1x1x128xf32> to vector<1x1xf32>
    %864 = vector.shape_cast %863 : vector<1x1xf32> to vector<1x1x1xf32>
    %865 = vector.broadcast %852 : vector<1x1x1xf32> to vector<1x2x128xf32>
    %866 = arith.cmpf ogt, %28, %865 : vector<1x2x128xf32>
    %cst_264 = arith.constant 1.000000e+00 : f32
    %cst_265 = arith.constant 0.000000e+00 : f32
    %867 = vector.broadcast %cst_264 : f32 to vector<1x2x128xf32>
    %868 = vector.broadcast %cst_265 : f32 to vector<1x2x128xf32>
    %869 = arith.select %866, %867, %868 : vector<1x2x128xi1>, vector<1x2x128xf32>
    %cst_266 = arith.constant dense<0.000000e+00> : vector<1x128xf32>
    %870 = vector.multi_reduction <add>, %869, %cst_266 [1] : vector<1x2x128xf32> to vector<1x128xf32>
    %871 = vector.shape_cast %870 : vector<1x128xf32> to vector<1x1x128xf32>
    %cst_267 = arith.constant dense<0.000000e+00> : vector<1x1xf32>
    %872 = vector.multi_reduction <add>, %871, %cst_267 [2] : vector<1x1x128xf32> to vector<1x1xf32>
    %873 = vector.shape_cast %872 : vector<1x1xf32> to vector<1x1x1xf32>
    %874 = vector.broadcast %855 : vector<1x1x1xf32> to vector<1x2x128xf32>
    %875 = arith.cmpf ogt, %28, %874 : vector<1x2x128xf32>
    %cst_268 = arith.constant 1.000000e+00 : f32
    %cst_269 = arith.constant 0.000000e+00 : f32
    %876 = vector.broadcast %cst_268 : f32 to vector<1x2x128xf32>
    %877 = vector.broadcast %cst_269 : f32 to vector<1x2x128xf32>
    %878 = arith.select %875, %876, %877 : vector<1x2x128xi1>, vector<1x2x128xf32>
    %cst_270 = arith.constant dense<0.000000e+00> : vector<1x128xf32>
    %879 = vector.multi_reduction <add>, %878, %cst_270 [1] : vector<1x2x128xf32> to vector<1x128xf32>
    %880 = vector.shape_cast %879 : vector<1x128xf32> to vector<1x1x128xf32>
    %cst_271 = arith.constant dense<0.000000e+00> : vector<1x1xf32>
    %881 = vector.multi_reduction <add>, %880, %cst_271 [2] : vector<1x1x128xf32> to vector<1x1xf32>
    %882 = vector.shape_cast %881 : vector<1x1xf32> to vector<1x1x1xf32>
    %883 = arith.cmpf oge, %864, %16 : vector<1x1x1xf32>
    %884 = arith.select %883, %849, %833 : vector<1x1x1xi1>, vector<1x1x1xf32>
    %885 = arith.cmpf oge, %873, %16 : vector<1x1x1xf32>
    %886 = arith.select %885, %852, %884 : vector<1x1x1xi1>, vector<1x1x1xf32>
    %887 = arith.cmpf oge, %882, %16 : vector<1x1x1xf32>
    %888 = arith.select %887, %855, %886 : vector<1x1x1xi1>, vector<1x1x1xf32>
    %889 = arith.cmpf olt, %882, %16 : vector<1x1x1xf32>
    %890 = arith.select %889, %855, %843 : vector<1x1x1xi1>, vector<1x1x1xf32>
    %891 = arith.cmpf olt, %882, %16 : vector<1x1x1xf32>
    %892 = arith.select %891, %882, %845 : vector<1x1x1xi1>, vector<1x1x1xf32>
    %893 = arith.cmpf olt, %873, %16 : vector<1x1x1xf32>
    %894 = arith.select %893, %852, %890 : vector<1x1x1xi1>, vector<1x1x1xf32>
    %895 = arith.cmpf olt, %873, %16 : vector<1x1x1xf32>
    %896 = arith.select %895, %873, %892 : vector<1x1x1xi1>, vector<1x1x1xf32>
    %897 = arith.cmpf olt, %864, %16 : vector<1x1x1xf32>
    %898 = arith.select %897, %849, %894 : vector<1x1x1xi1>, vector<1x1x1xf32>
    %899 = arith.cmpf olt, %864, %16 : vector<1x1x1xf32>
    %900 = arith.select %899, %864, %896 : vector<1x1x1xi1>, vector<1x1x1xf32>
    %c15_i32 = arith.constant 15 : i32
    %901 = arith.subf %898, %888 : vector<1x1x1xf32>
    %cst_272 = arith.constant 2.500000e-01 : f32
    %902 = vector.broadcast %cst_272 : f32 to vector<1x1x1xf32>
    %903 = arith.mulf %902, %901 : vector<1x1x1xf32>
    %904 = arith.addf %888, %903 : vector<1x1x1xf32>
    %cst_273 = arith.constant 5.000000e-01 : f32
    %905 = vector.broadcast %cst_273 : f32 to vector<1x1x1xf32>
    %906 = arith.mulf %905, %901 : vector<1x1x1xf32>
    %907 = arith.addf %888, %906 : vector<1x1x1xf32>
    %cst_274 = arith.constant 7.500000e-01 : f32
    %908 = vector.broadcast %cst_274 : f32 to vector<1x1x1xf32>
    %909 = arith.mulf %908, %901 : vector<1x1x1xf32>
    %910 = arith.addf %888, %909 : vector<1x1x1xf32>
    %911 = vector.broadcast %904 : vector<1x1x1xf32> to vector<1x2x128xf32>
    %912 = arith.cmpf ogt, %28, %911 : vector<1x2x128xf32>
    %cst_275 = arith.constant 1.000000e+00 : f32
    %cst_276 = arith.constant 0.000000e+00 : f32
    %913 = vector.broadcast %cst_275 : f32 to vector<1x2x128xf32>
    %914 = vector.broadcast %cst_276 : f32 to vector<1x2x128xf32>
    %915 = arith.select %912, %913, %914 : vector<1x2x128xi1>, vector<1x2x128xf32>
    %cst_277 = arith.constant dense<0.000000e+00> : vector<1x128xf32>
    %916 = vector.multi_reduction <add>, %915, %cst_277 [1] : vector<1x2x128xf32> to vector<1x128xf32>
    %917 = vector.shape_cast %916 : vector<1x128xf32> to vector<1x1x128xf32>
    %cst_278 = arith.constant dense<0.000000e+00> : vector<1x1xf32>
    %918 = vector.multi_reduction <add>, %917, %cst_278 [2] : vector<1x1x128xf32> to vector<1x1xf32>
    %919 = vector.shape_cast %918 : vector<1x1xf32> to vector<1x1x1xf32>
    %920 = vector.broadcast %907 : vector<1x1x1xf32> to vector<1x2x128xf32>
    %921 = arith.cmpf ogt, %28, %920 : vector<1x2x128xf32>
    %cst_279 = arith.constant 1.000000e+00 : f32
    %cst_280 = arith.constant 0.000000e+00 : f32
    %922 = vector.broadcast %cst_279 : f32 to vector<1x2x128xf32>
    %923 = vector.broadcast %cst_280 : f32 to vector<1x2x128xf32>
    %924 = arith.select %921, %922, %923 : vector<1x2x128xi1>, vector<1x2x128xf32>
    %cst_281 = arith.constant dense<0.000000e+00> : vector<1x128xf32>
    %925 = vector.multi_reduction <add>, %924, %cst_281 [1] : vector<1x2x128xf32> to vector<1x128xf32>
    %926 = vector.shape_cast %925 : vector<1x128xf32> to vector<1x1x128xf32>
    %cst_282 = arith.constant dense<0.000000e+00> : vector<1x1xf32>
    %927 = vector.multi_reduction <add>, %926, %cst_282 [2] : vector<1x1x128xf32> to vector<1x1xf32>
    %928 = vector.shape_cast %927 : vector<1x1xf32> to vector<1x1x1xf32>
    %929 = vector.broadcast %910 : vector<1x1x1xf32> to vector<1x2x128xf32>
    %930 = arith.cmpf ogt, %28, %929 : vector<1x2x128xf32>
    %cst_283 = arith.constant 1.000000e+00 : f32
    %cst_284 = arith.constant 0.000000e+00 : f32
    %931 = vector.broadcast %cst_283 : f32 to vector<1x2x128xf32>
    %932 = vector.broadcast %cst_284 : f32 to vector<1x2x128xf32>
    %933 = arith.select %930, %931, %932 : vector<1x2x128xi1>, vector<1x2x128xf32>
    %cst_285 = arith.constant dense<0.000000e+00> : vector<1x128xf32>
    %934 = vector.multi_reduction <add>, %933, %cst_285 [1] : vector<1x2x128xf32> to vector<1x128xf32>
    %935 = vector.shape_cast %934 : vector<1x128xf32> to vector<1x1x128xf32>
    %cst_286 = arith.constant dense<0.000000e+00> : vector<1x1xf32>
    %936 = vector.multi_reduction <add>, %935, %cst_286 [2] : vector<1x1x128xf32> to vector<1x1xf32>
    %937 = vector.shape_cast %936 : vector<1x1xf32> to vector<1x1x1xf32>
    %938 = arith.cmpf oge, %919, %16 : vector<1x1x1xf32>
    %939 = arith.select %938, %904, %888 : vector<1x1x1xi1>, vector<1x1x1xf32>
    %940 = arith.cmpf oge, %928, %16 : vector<1x1x1xf32>
    %941 = arith.select %940, %907, %939 : vector<1x1x1xi1>, vector<1x1x1xf32>
    %942 = arith.cmpf oge, %937, %16 : vector<1x1x1xf32>
    %943 = arith.select %942, %910, %941 : vector<1x1x1xi1>, vector<1x1x1xf32>
    %944 = arith.cmpf olt, %937, %16 : vector<1x1x1xf32>
    %945 = arith.select %944, %910, %898 : vector<1x1x1xi1>, vector<1x1x1xf32>
    %946 = arith.cmpf olt, %937, %16 : vector<1x1x1xf32>
    %947 = arith.select %946, %937, %900 : vector<1x1x1xi1>, vector<1x1x1xf32>
    %948 = arith.cmpf olt, %928, %16 : vector<1x1x1xf32>
    %949 = arith.select %948, %907, %945 : vector<1x1x1xi1>, vector<1x1x1xf32>
    %950 = arith.cmpf olt, %928, %16 : vector<1x1x1xf32>
    %951 = arith.select %950, %928, %947 : vector<1x1x1xi1>, vector<1x1x1xf32>
    %952 = arith.cmpf olt, %919, %16 : vector<1x1x1xf32>
    %953 = arith.select %952, %904, %949 : vector<1x1x1xi1>, vector<1x1x1xf32>
    %954 = arith.cmpf olt, %919, %16 : vector<1x1x1xf32>
    %955 = arith.select %954, %919, %951 : vector<1x1x1xi1>, vector<1x1x1xf32>
    %956 = vector.broadcast %953 : vector<1x1x1xf32> to vector<1x2x128xf32>
    %957 = arith.cmpf ogt, %28, %956 : vector<1x2x128xf32>
    %cst_287 = arith.constant 0.000000e+00 : f32
    %958 = vector.broadcast %cst_287 : f32 to vector<1x2x128xf32>
    %959 = arith.select %957, %26, %958 : vector<1x2x128xi1>, vector<1x2x128xf32>
    %cst_288 = arith.constant dense<0.000000e+00> : vector<1x128xf32>
    %960 = vector.multi_reduction <add>, %959, %cst_288 [1] : vector<1x2x128xf32> to vector<1x128xf32>
    %961 = vector.shape_cast %960 : vector<1x128xf32> to vector<1x1x128xf32>
    %cst_289 = arith.constant dense<0.000000e+00> : vector<1x1xf32>
    %962 = vector.multi_reduction <add>, %961, %cst_289 [2] : vector<1x1x128xf32> to vector<1x1xf32>
    %963 = vector.shape_cast %962 : vector<1x1xf32> to vector<1x1x1xf32>
    %cst_290 = arith.constant 0.000000e+00 : f32
    %964 = vector.broadcast %cst_290 : f32 to vector<1x1x1xf32>
    %965 = arith.cmpf ogt, %16, %964 : vector<1x1x1xf32>
    %966 = arith.subf %16, %955 : vector<1x1x1xf32>
    %cst_291 = arith.constant 1.000000e+00 : f32
    %967 = vector.broadcast %cst_291 : f32 to vector<1x1x1xf32>
    %968 = arith.cmpf olt, %953, %967 : vector<1x1x1xf32>
    %cst_292 = arith.constant 5.000000e-01 : f32
    %969 = vector.broadcast %cst_292 : f32 to vector<1x1x1xf32>
    %970 = arith.mulf %969, %953 : vector<1x1x1xf32>
    %971 = arith.mulf %970, %953 : vector<1x1x1xf32>
    %cst_293 = arith.constant 5.000000e-01 : f32
    %972 = vector.broadcast %cst_293 : f32 to vector<1x1x1xf32>
    %973 = arith.subf %953, %972 : vector<1x1x1xf32>
    %974 = arith.select %968, %971, %973 : vector<1x1x1xi1>, vector<1x1x1xf32>
    %975 = arith.mulf %966, %974 : vector<1x1x1xf32>
    %976 = arith.addf %963, %975 : vector<1x1x1xf32>
    %cst_294 = arith.constant 0.000000e+00 : f32
    %977 = vector.broadcast %cst_294 : f32 to vector<1x1x1xf32>
    %978 = arith.select %965, %976, %977 : vector<1x1x1xi1>, vector<1x1x1xf32>
    %979 = tpu.iota {dimensions = array<i32: 1>} : vector<1x128xi32>
    %c0_i32_295 = arith.constant 0 : i32
    %980 = vector.broadcast %c0_i32_295 : i32 to vector<1x128xi32>
    %981 = arith.cmpi eq, %979, %980 : vector<1x128xi32>
    %982 = vector.shape_cast %34 : vector<1x1x1xf32> to vector<1x1xf32>
    %cst_296 = arith.constant 0.000000e+00 : f32
    %983 = vector.shape_cast %982 : vector<1x1xf32> to vector<1x1xf32>
    %984 = vector.broadcast %983 : vector<1x1xf32> to vector<1x128xf32>
    %985 = vector.broadcast %cst_296 : f32 to vector<1x128xf32>
    %986 = arith.select %981, %984, %985 : vector<1x128xi1>, vector<1x128xf32>
    %c1_i32_297 = arith.constant 1 : i32
    %987 = vector.broadcast %c1_i32_297 : i32 to vector<1x128xi32>
    %988 = arith.cmpi eq, %979, %987 : vector<1x128xi32>
    %989 = vector.shape_cast %12 : vector<1x1x1xf32> to vector<1x1xf32>
    %cst_298 = arith.constant 0.000000e+00 : f32
    %990 = vector.shape_cast %989 : vector<1x1xf32> to vector<1x1xf32>
    %991 = vector.broadcast %990 : vector<1x1xf32> to vector<1x128xf32>
    %992 = vector.broadcast %cst_298 : f32 to vector<1x128xf32>
    %993 = arith.select %988, %991, %992 : vector<1x128xi1>, vector<1x128xf32>
    %994 = arith.addf %986, %993 : vector<1x128xf32>
    %c2_i32_299 = arith.constant 2 : i32
    %995 = vector.broadcast %c2_i32_299 : i32 to vector<1x128xi32>
    %996 = arith.cmpi eq, %979, %995 : vector<1x128xi32>
    %997 = vector.shape_cast %978 : vector<1x1x1xf32> to vector<1x1xf32>
    %cst_300 = arith.constant 0.000000e+00 : f32
    %998 = vector.shape_cast %997 : vector<1x1xf32> to vector<1x1xf32>
    %999 = vector.broadcast %998 : vector<1x1xf32> to vector<1x128xf32>
    %1000 = vector.broadcast %cst_300 : f32 to vector<1x128xf32>
    %1001 = arith.select %996, %999, %1000 : vector<1x128xi1>, vector<1x128xf32>
    %1002 = arith.addf %994, %1001 : vector<1x128xf32>
    %c3_i32_301 = arith.constant 3 : i32
    %1003 = vector.broadcast %c3_i32_301 : i32 to vector<1x128xi32>
    %1004 = arith.cmpi eq, %979, %1003 : vector<1x128xi32>
    %1005 = vector.shape_cast %16 : vector<1x1x1xf32> to vector<1x1xf32>
    %cst_302 = arith.constant 0.000000e+00 : f32
    %1006 = vector.shape_cast %1005 : vector<1x1xf32> to vector<1x1xf32>
    %1007 = vector.broadcast %1006 : vector<1x1xf32> to vector<1x128xf32>
    %1008 = vector.broadcast %cst_302 : f32 to vector<1x128xf32>
    %1009 = arith.select %1004, %1007, %1008 : vector<1x128xi1>, vector<1x128xf32>
    %1010 = arith.addf %1002, %1009 : vector<1x128xf32>
    %c4_i32_303 = arith.constant 4 : i32
    %1011 = vector.broadcast %c4_i32_303 : i32 to vector<1x128xi32>
    %1012 = arith.cmpi eq, %979, %1011 : vector<1x128xi32>
    %1013 = vector.shape_cast %69 : vector<1x1x1xf32> to vector<1x1xf32>
    %cst_304 = arith.constant 0.000000e+00 : f32
    %1014 = vector.shape_cast %1013 : vector<1x1xf32> to vector<1x1xf32>
    %1015 = vector.broadcast %1014 : vector<1x1xf32> to vector<1x128xf32>
    %1016 = vector.broadcast %cst_304 : f32 to vector<1x128xf32>
    %1017 = arith.select %1012, %1015, %1016 : vector<1x128xi1>, vector<1x128xf32>
    %1018 = arith.addf %1010, %1017 : vector<1x128xf32>
    %c0_305 = arith.constant 0 : index
    %c0_306 = arith.constant 0 : index
    %c0_307 = arith.constant 0 : index
    %1019 = vector.load %arg3[%c0_305, %c0_306, %c0_307] : memref<1x1x128xf32, #tpu.memory_space<vmem>>, vector<1x1x128xf32>
    %1020 = vector.shape_cast %1019 : vector<1x1x128xf32> to vector<1x128xf32>
    %1021 = vector.shape_cast %1018 : vector<1x128xf32> to vector<1x1x128xf32>
    tpu.vector_store %arg3[%c0_305, %c0_306, %c0_307], %1021 {strides = array<i32>} : memref<1x1x128xf32, #tpu.memory_space<vmem>>, vector<1x1x128xf32>,
    return
  }
  func.func @transform_0(%arg0: i32) -> (i32, i32, i32, i32) {
    %c0_i32 = arith.constant 0 : i32
    %c0_i32_0 = arith.constant 0 : i32
    %c0_i32_1 = arith.constant 0 : i32
    %c0_i32_2 = arith.constant 0 : i32
    return %arg0, %c0_i32, %c0_i32_0, %c0_i32_1 : i32, i32, i32, i32
  }
  func.func @transform_1(%arg0: i32) -> (i32, i32, i32, i32) {
    %c0_i32 = arith.constant 0 : i32
    %c0_i32_0 = arith.constant 0 : i32
    %c0_i32_1 = arith.constant 0 : i32
    %c0_i32_2 = arith.constant 0 : i32
    return %arg0, %c0_i32, %c0_i32_0, %c0_i32_1 : i32, i32, i32, i32
  }
  func.func @transform_2(%arg0: i32) -> (i32, i32, i32) {
    %c0_i32 = arith.constant 0 : i32
    %c0_i32_0 = arith.constant 0 : i32
    %c0_i32_1 = arith.constant 0 : i32
    return %arg0, %c0_i32, %c0_i32_0 : i32, i32, i32
  }
}

</mosaic_0001>

<llo_original>
// kernel: centre_line_loss.1
$region0: #{centre_line_loss.1}
  #allocation0 [shape = 'u32[]', space=smem, size = 0x4, offset = 0x4, fixed_abs, tag = 'smem constant byte address 0x4 - core index']
  #allocation1 [shape = 'u32[144,128]{1,0:T(1,128)}', space=vmem, size = 0x12000, scoped, tag = 'internal scratch']
  %s0 = inlined_call_operand.vmem [shape: f32[2,3,2,128], index: 0, kind: input, shape index: {}]
  %s1 = inlined_call_operand.vmem [shape: f32[2,3,2,128], index: 1, kind: input, shape index: {}]
  %s2 = inlined_call_operand.vmem [shape: f32[2,1,128], index: 2, kind: output, shape index: {}]
  %s3 = sld [smem:[#allocation0]]
  $region41: #{centre_line_loss.1} parent=0
    _
  %s5 = ssub.s32 1, %s3
  %s6 = scalar_select 0, %s5, %s3
  loop: start=0, step=1, limit=4
  $region2: #{centre_line_loss.1} parent=0 // loop_pre_header
    _
  $region3: #{centre_line_loss.1} parent=0 // loop_header
    %s8 = sphi 0, %s12
    %p9 = scmp.ge.s32.totalorder %s8, 4
    %s18 = sphi 0, %s20
    %s21 = sphi 0, %s18
    %s22 = sphi 0, %s21
    %s38 = sphi 0, %s22
    %s44 = sphi 0, %s46
    %s47 = sphi 0, %s44
    %s48 = sphi 0, %s47
    %s64 = sphi 0, %s48
    %s70 = sphi 0, %s72
    %s73 = sphi 0, %s70
    %s74 = sphi 0, %s73
    %s90 = sphi 0, %s74
  $region4: #{centre_line_loss.1} parent=0 // loop_header_branch
    %11 = sbr.rel (%p9) target = $region8
  $region5: #{centre_line_loss.1} parent=0 // loop_body
    %s13 = ssub.s32 %s8, 1
    %s14 = ssub.s32 %s8, 2
    %s15 = sadd.s32 %s8, 1
    %s16 = ssub.s32 %s8, %s15
    %p17 = scmp.eq.s32.totalorder %s16, 0
    %s19 = sadd.s32 %s18, 1
    %s20 = scalar_select %p17, %s18, %s19
    %p23 = pneg %p17
    %p24 = scmp.eq.s32.totalorder %s8, 1
    %p25 = por %p23, %p24
    %p26 = scmp.ne.s32.totalorder %s18, %s21
    %p27 = scmp.eq.s32.totalorder %s8, 0
    %p28 = por %p26, %p27
    %p29 = scmp.ne.s32.totalorder %s18, %s21
    %p30 = scmp.eq.s32.totalorder %s13, 1
    %p31 = por %p29, %p30
    %p32 = scmp.ne.s32.totalorder %s21, %s22
    %p33 = scmp.eq.s32.totalorder %s13, 0
    %p34 = por %p32, %p33
    %p35 = scmp.ne.s32.totalorder %s21, %s22
    %p36 = scmp.eq.s32.totalorder %s14, 1
    %p37 = por %p35, %p36
    %p39 = scmp.ne.s32.totalorder %s22, %s38
    %p40 = scmp.eq.s32.totalorder %s14, 0
    %p41 = por %p39, %p40
    %s42 = ssub.s32 %s8, %s15
    %p43 = scmp.eq.s32.totalorder %s42, 0
    %s45 = sadd.s32 %s44, 1
    %s46 = scalar_select %p43, %s44, %s45
    %p49 = pneg %p43
    %p50 = scmp.eq.s32.totalorder %s8, 1
    %p51 = por %p49, %p50
    %p52 = scmp.ne.s32.totalorder %s44, %s47
    %p53 = scmp.eq.s32.totalorder %s8, 0
    %p54 = por %p52, %p53
    %p55 = scmp.ne.s32.totalorder %s44, %s47
    %p56 = scmp.eq.s32.totalorder %s13, 1
    %p57 = por %p55, %p56
    %p58 = scmp.ne.s32.totalorder %s47, %s48
    %p59 = scmp.eq.s32.totalorder %s13, 0
    %p60 = por %p58, %p59
    %p61 = scmp.ne.s32.totalorder %s47, %s48
    %p62 = scmp.eq.s32.totalorder %s14, 1
    %p63 = por %p61, %p62
    %p65 = scmp.ne.s32.totalorder %s48, %s64
    %p66 = scmp.eq.s32.totalorder %s14, 0
    %p67 = por %p65, %p66
    %s68 = ssub.s32 %s8, %s15
    %p69 = scmp.eq.s32.totalorder %s68, 0
    %s71 = sadd.s32 %s70, 1
    %s72 = scalar_select %p69, %s70, %s71
    %p75 = pneg %p69
    %p76 = scmp.eq.s32.totalorder %s8, 1
    %p77 = por %p75, %p76
    %p78 = scmp.ne.s32.totalorder %s70, %s73
    %p79 = scmp.eq.s32.totalorder %s8, 0
    %p80 = por %p78, %p79
    %p81 = scmp.ne.s32.totalorder %s70, %s73
    %p82 = scmp.eq.s32.totalorder %s13, 1
    %p83 = por %p81, %p82
    %p84 = scmp.ne.s32.totalorder %s73, %s74
    %p85 = scmp.eq.s32.totalorder %s13, 0
    %p86 = por %p84, %p85
    %p87 = scmp.ne.s32.totalorder %s73, %s74
    %p88 = scmp.eq.s32.totalorder %s14, 1
    %p89 = por %p87, %p88
    %p91 = scmp.ne.s32.totalorder %s74, %s90
    %p92 = scmp.eq.s32.totalorder %s14, 0
    %p93 = por %p91, %p92
    %p94 = scmp.le.s32.totalorder 1, %s8
    %p95 = scmp.lt.s32.totalorder %s8, 3
    %p96 = pnand %p94, %p95
    %p97 = pneg %p96
    // Predicated region
    $region9: #{centre_line_loss.1} parent=5 // pred_check
      _
    $region10: #{centre_line_loss.1} parent=5 // pred_check_branch
      %99 = sbr.rel (%p96) target = $region12
    $region11: #{centre_line_loss.1} parent=5 // pred_region
      %s100 = ssub.s32 %s8, 1
    $region12: #{centre_line_loss.1} parent=5 // pred_fallthru
      _
    %p101 = scmp.lt.s32.totalorder %s8, 2
    // Predicated region
    $region13: #{centre_line_loss.1} parent=5 // pred_check
      %p102 = pneg %p101
    $region14: #{centre_line_loss.1} parent=5 // pred_check_branch
      %104 = sbr.rel (%p102) target = $region16
    $region15: #{centre_line_loss.1} parent=5 // pred_region
      // Predicated region
      $region17: #{centre_line_loss.1} parent=15 // pred_check
        %p105 = pneg %p28
      $region18: #{centre_line_loss.1} parent=15 // pred_check_branch
        %107 = sbr.rel (%p105) target = $region20
      $region19: #{centre_line_loss.1} parent=15 // pred_region
        %p108 = scmp.lt.s32.totalorder %s8, 1
        %s109 = scalar_select %p108, %s8, 1
        %s110 = smul.addr %s109, 3
        %s111 = smul.addr %s110, 2
        %s112 = scalar_lea.vmem %s0, %s111
      $region20: #{centre_line_loss.1} parent=15 // pred_fallthru
        _
      // Predicated region
      $region21: #{centre_line_loss.1} parent=15 // pred_check
        %p113 = pneg %p54
      $region22: #{centre_line_loss.1} parent=15 // pred_check_branch
        %115 = sbr.rel (%p113) target = $region24
      $region23: #{centre_line_loss.1} parent=15 // pred_region
        %p116 = scmp.lt.s32.totalorder %s8, 1
        %s117 = scalar_select %p116, %s8, 1
        %s118 = smul.addr %s117, 3
        %s119 = smul.addr %s118, 2
        %s120 = scalar_lea.vmem %s1, %s119
      $region24: #{centre_line_loss.1} parent=15 // pred_fallthru
        _
    $region16: #{centre_line_loss.1} parent=5 // pred_fallthru
      _
    %p121 = scmp.le.s32.totalorder 1, %s8
    %p122 = scmp.lt.s32.totalorder %s8, 3
    %p123 = pnand %p121, %p122
    %p124 = pneg %p123
    // Predicated region
    $region25: #{centre_line_loss.1} parent=5 // pred_check
      _
    $region26: #{centre_line_loss.1} parent=5 // pred_check_branch
      %126 = sbr.rel (%p123) target = $region28
    $region27: #{centre_line_loss.1} parent=5 // pred_region
      %s127 = ssub.s32 %s8, 1
      %p128 = scmp.lt.s32.totalorder %s13, 1
      %s129 = scalar_select %p128, %s13, 1
      %s130 = smul.addr %s129, 3
      %s131 = smul.addr %s130, 2
      %s132 = scalar_lea.vmem %s0, %s131
      %p133 = pneg %p34
      %p134 = pneg %p31
      %p135 = scmp.lt.s32.totalorder %s13, 1
      %s136 = scalar_select %p135, %s13, 1
      %s137 = smul.addr %s136, 3
      %s138 = smul.addr %s137, 2
      %s139 = scalar_lea.vmem %s1, %s138
      %p140 = pneg %p60
      %p141 = pneg %p57
      %p142 = pneg %p86
      %p143 = pneg %p83
      %p144 = scmp.lt.s32.totalorder %s13, 1
      %s145 = scalar_select %p144, %s13, 1
      %s146 = scalar_lea.vmem %s2, %s145
      %p147 = scmp.lt.s32.totalorder %s13, 1
      %s148 = scalar_select %p147, %s13, 1
      %s149 = smul.addr %s148, 3
      %s150 = smul.addr %s149, 2
      %s151 = scalar_lea.vmem %s0, %s150
      %p152 = scmp.lt.s32.totalorder %s13, 1
      %s153 = scalar_select %p152, %s13, 1
      %s154 = smul.addr %s153, 3
      %s155 = smul.addr %s154, 2
      %s156 = scalar_lea.vmem %s1, %s155
      %p157 = scmp.lt.s32.totalorder %s13, 1
      %s158 = scalar_select %p157, %s13, 1
      %s159 = scalar_lea.vmem %s2, %s158
      %v160 = vld [vmem:[%s151] sm:$0x3]
      %v161 = vld [vmem:[%s156] sm:$0x3]
      %vm162 = vcmp.ge.f32.partialorder %v160, 0.5
      %v163 = vsel %vm162, 1.0, 0.0
      %vm164 = vcmask 1041408
      %v165 = vsel %vm164, %v163, 0.0
      %v166 = vrot.slane %v165, 4
      %v167 = vadd.f32 %v165, %v166
      %v168 = vrot.slane %v167, 2
      %v169 = vadd.f32 %v167, %v168
      %v170 = vrot.slane %v169, 1
      %v171 = vadd.f32 %v169, %v170
      %172 = vadd.xlane.f32.xlu0 %v171
      %v173 = vpop.xlane.xlu0 %172
      %v174 = vmul.f32 %v173, 3.0
      %v175 = vmin.f32 %v174, 255.0
      %v176 = vsub.f32 %v160, %v161
      %v177 = vand.u32 2147483647, %v176
      %vm178 = vcmp.lt.f32.partialorder %v177, 1.0
      %v179 = vmul.f32 %v177, 0.5
      %v180 = vmul.f32 %v179, %v177
      %v181 = vsub.f32 %v177, 0.5
      %v182 = vsel %vm178, %v180, %v181
      %v183 = vsel %vm162, 0.0, %v177
      %v184 = vsel %vm162, %v182, 0.0
      %v185 = vsel %vm164, %v184, 0.0
      %v186 = vrot.slane %v185, 4
      %v187 = vadd.f32 %v185, %v186
      %v188 = vrot.slane %v187, 2
      %v189 = vadd.f32 %v187, %v188
      %v190 = vrot.slane %v189, 1
      %v191 = vadd.f32 %v189, %v190
      %192 = vadd.xlane.f32.xlu0 %v191
      %v193 = vpop.xlane.xlu0 %192
      %s194 = scalar_lea.vmem %s151, 2
      %v195 = vld [vmem:[%s194] sm:$0x3]
      %s196 = scalar_lea.vmem %s156, 2
      %v197 = vld [vmem:[%s196] sm:$0x3]
      %v198 = vsub.f32 %v195, %v197
      %v199 = vand.u32 2147483647, %v198
      %vm200 = vcmp.lt.f32.partialorder %v199, 1.0
      %v201 = vmul.f32 %v199, 0.5
      %v202 = vmul.f32 %v201, %v199
      %v203 = vsub.f32 %v199, 0.5
      %v204 = vsel %vm200, %v202, %v203
      %s205 = scalar_lea.vmem %s151, 4
      %v206 = vld [vmem:[%s205] sm:$0x3]
      %s207 = scalar_lea.vmem %s156, 4
      %v208 = vld [vmem:[%s207] sm:$0x3]
      %v209 = vsub.f32 %v206, %v208
      %v210 = vand.u32 2147483647, %v209
      %vm211 = vcmp.lt.f32.partialorder %v210, 1.0
      %v212 = vmul.f32 %v210, 0.5
      %v213 = vmul.f32 %v212, %v210
      %v214 = vsub.f32 %v210, 0.5
      %v215 = vsel %vm211, %v213, %v214
      %v216 = vadd.f32 %v204, %v215
      %v217 = vsel %vm162, %v216, 0.0
      %v218 = vsel %vm164, %v217, 0.0
      %v219 = vrot.slane %v218, 4
      %v220 = vadd.f32 %v218, %v219
      %v221 = vrot.slane %v220, 2
      %v222 = vadd.f32 %v220, %v221
      %v223 = vrot.slane %v222, 1
      %v224 = vadd.f32 %v222, %v223
      %225 = vadd.xlane.f32.xlu0 %v224
      %v226 = vpop.xlane.xlu0 %225
      %v227 = vsel %vm164, %v183, -inf
      %v228 = vrot.slane %v227, 4
      %v229 = vmax.f32 %v227, %v228
      %v230 = vrot.slane %v229, 2
      %v231 = vmax.f32 %v229, %v230
      %v232 = vrot.slane %v231, 1
      %v233 = vmax.f32 %v231, %v232
      %234 = vmax.xlane.f32.xlu0 %v233
      %v235 = vpop.xlane.xlu0 %234
      %v236 = vsub.f32 %v235, -1.0
      %v237 = vmul.f32 %v236, 0.25
      %v238 = vadd.f32 %v237, -1.0
      %v239 = vmul.f32 %v236, 0.5
      %v240 = vadd.f32 %v239, -1.0
      %v241 = vmul.f32 %v236, 0.75
      %v242 = vadd.f32 %v241, -1.0
      %vm243 = vcmp.gt.f32.partialorder %v183, %v238
      %v244 = vsel %vm243, 1.0, 0.0
      %v245 = vsel %vm164, %v244, 0.0
      %v246 = vrot.slane %v245, 4
      %v247 = vadd.f32 %v245, %v246
      %v248 = vrot.slane %v247, 2
      %v249 = vadd.f32 %v247, %v248
      %v250 = vrot.slane %v249, 1
      %v251 = vadd.f32 %v249, %v250
      %252 = vadd.xlane.f32.xlu0 %v251
      %v253 = vpop.xlane.xlu0 %252
      %vm254 = vcmp.gt.f32.partialorder %v183, %v240
      %v255 = vsel %vm254, 1.0, 0.0
      %v256 = vsel %vm164, %v255, 0.0
      %v257 = vrot.slane %v256, 4
      %v258 = vadd.f32 %v256, %v257
      %v259 = vrot.slane %v258, 2
      %v260 = vadd.f32 %v258, %v259
      %v261 = vrot.slane %v260, 1
      %v262 = vadd.f32 %v260, %v261
      %263 = vadd.xlane.f32.xlu0 %v262
      %v264 = vpop.xlane.xlu0 %263
      %vm265 = vcmp.gt.f32.partialorder %v183, %v242
      %v266 = vsel %vm265, 1.0, 0.0
      %v267 = vsel %vm164, %v266, 0.0
      %v268 = vrot.slane %v267, 4
      %v269 = vadd.f32 %v267, %v268
      %v270 = vrot.slane %v269, 2
      %v271 = vadd.f32 %v269, %v270
      %v272 = vrot.slane %v271, 1
      %v273 = vadd.f32 %v271, %v272
      %274 = vadd.xlane.f32.xlu0 %v273
      %v275 = vpop.xlane.xlu0 %274
      %vm276 = vcmp.ge.f32.partialorder %v253, %v175
      %v277 = vsel %vm276, %v238, -1.0
      %vm278 = vcmp.ge.f32.partialorder %v264, %v175
      %v279 = vsel %vm278, %v240, %v277
      %vm280 = vcmp.ge.f32.partialorder %v275, %v175
      %v281 = vsel %vm280, %v242, %v279
      %vm282 = vcmp.lt.f32.partialorder %v275, %v175
      %v283 = vsel %vm282, %v242, %v235
      %v284 = vsel %vm282, %v275, 0.0
      %vm285 = vcmp.lt.f32.partialorder %v264, %v175
      %v286 = vsel %vm285, %v240, %v283
      %v287 = vsel %vm285, %v264, %v284
      %vm288 = vcmp.lt.f32.partialorder %v253, %v175
      %v289 = vsel %vm288, %v238, %v286
      %v290 = vsel %vm288, %v253, %v287
      %v291 = vsub.f32 %v289, %v281
      %v292 = vmul.f32 %v291, 0.25
      %v293 = vadd.f32 %v281, %v292
      %v294 = vmul.f32 %v291, 0.5
      %v295 = vadd.f32 %v281, %v294
      %v296 = vmul.f32 %v291, 0.75
      %v297 = vadd.f32 %v281, %v296
      %vm298 = vcmp.gt.f32.partialorder %v183, %v293
      %v299 = vsel %vm298, 1.0, 0.0
      %v300 = vsel %vm164, %v299, 0.0
      %v301 = vrot.slane %v300, 4
      %v302 = vadd.f32 %v300, %v301
      %v303 = vrot.slane %v302, 2
      %v304 = vadd.f32 %v302, %v303
      %v305 = vrot.slane %v304, 1
      %v306 = vadd.f32 %v304, %v305
      %307 = vadd.xlane.f32.xlu0 %v306
      %v308 = vpop.xlane.xlu0 %307
      %vm309 = vcmp.gt.f32.partialorder %v183, %v295
      %v310 = vsel %vm309, 1.0, 0.0
      %v311 = vsel %vm164, %v310, 0.0
      %v312 = vrot.slane %v311, 4
      %v313 = vadd.f32 %v311, %v312
      %v314 = vrot.slane %v313, 2
      %v315 = vadd.f32 %v313, %v314
      %v316 = vrot.slane %v315, 1
      %v317 = vadd.f32 %v315, %v316
      %318 = vadd.xlane.f32.xlu0 %v317
      %v319 = vpop.xlane.xlu0 %318
      %vm320 = vcmp.gt.f32.partialorder %v183, %v297
      %v321 = vsel %vm320, 1.0, 0.0
      %v322 = vsel %vm164, %v321, 0.0
      %v323 = vrot.slane %v322, 4
      %v324 = vadd.f32 %v322, %v323
      %v325 = vrot.slane %v324, 2
      %v326 = vadd.f32 %v324, %v325
      %v327 = vrot.slane %v326, 1
      %v328 = vadd.f32 %v326, %v327
      %329 = vadd.xlane.f32.xlu0 %v328
      %v330 = vpop.xlane.xlu0 %329
      %vm331 = vcmp.ge.f32.partialorder %v308, %v175
      %v332 = vsel %vm331, %v293, %v281
      %vm333 = vcmp.ge.f32.partialorder %v319, %v175
      %v334 = vsel %vm333, %v295, %v332
      %vm335 = vcmp.ge.f32.partialorder %v330, %v175
      %v336 = vsel %vm335, %v297, %v334
      %vm337 = vcmp.lt.f32.partialorder %v330, %v175
      %v338 = vsel %vm337, %v297, %v289
      %v339 = vsel %vm337, %v330, %v290
      %vm340 = vcmp.lt.f32.partialorder %v319, %v175
      %v341 = vsel %vm340, %v295, %v338
      %v342 = vsel %vm340, %v319, %v339
      %vm343 = vcmp.lt.f32.partialorder %v308, %v175
      %v344 = vsel %vm343, %v293, %v341
      %v345 = vsel %vm343, %v308, %v342
      %v346 = vsub.f32 %v344, %v336
      %v347 = vmul.f32 %v346, 0.25
      %v348 = vadd.f32 %v336, %v347
      %v349 = vmul.f32 %v346, 0.5
      %v350 = vadd.f32 %v336, %v349
      %v351 = vmul.f32 %v346, 0.75
      %v352 = vadd.f32 %v336, %v351
      %vm353 = vcmp.gt.f32.partialorder %v183, %v348
      %v354 = vsel %vm353, 1.0, 0.0
      %v355 = vsel %vm164, %v354, 0.0
      %v356 = vrot.slane %v355, 4
      %v357 = vadd.f32 %v355, %v356
      %v358 = vrot.slane %v357, 2
      %v359 = vadd.f32 %v357, %v358
      %v360 = vrot.slane %v359, 1
      %v361 = vadd.f32 %v359, %v360
      %362 = vadd.xlane.f32.xlu0 %v361
      %v363 = vpop.xlane.xlu0 %362
      %vm364 = vcmp.gt.f32.partialorder %v183, %v350
      %v365 = vsel %vm364, 1.0, 0.0
      %v366 = vsel %vm164, %v365, 0.0
      %v367 = vrot.slane %v366, 4
      %v368 = vadd.f32 %v366, %v367
      %v369 = vrot.slane %v368, 2
      %v370 = vadd.f32 %v368, %v369
      %v371 = vrot.slane %v370, 1
      %v372 = vadd.f32 %v370, %v371
      %373 = vadd.xlane.f32.xlu0 %v372
      %v374 = vpop.xlane.xlu0 %373
      %vm375 = vcmp.gt.f32.partialorder %v183, %v352
      %v376 = vsel %vm375, 1.0, 0.0
      %v377 = vsel %vm164, %v376, 0.0
      %v378 = vrot.slane %v377, 4
      %v379 = vadd.f32 %v377, %v378
      %v380 = vrot.slane %v379, 2
      %v381 = vadd.f32 %v379, %v380
      %v382 = vrot.slane %v381, 1
      %v383 = vadd.f32 %v381, %v382
      %384 = vadd.xlane.f32.xlu0 %v383
      %v385 = vpop.xlane.xlu0 %384
      %vm386 = vcmp.ge.f32.partialorder %v363, %v175
      %v387 = vsel %vm386, %v348, %v336
      %vm388 = vcmp.ge.f32.partialorder %v374, %v175
      %v389 = vsel %vm388, %v350, %v387
      %vm390 = vcmp.ge.f32.partialorder %v385, %v175
      %v391 = vsel %vm390, %v352, %v389
      %vm392 = vcmp.lt.f32.partialorder %v385, %v175
      %v393 = vsel %vm392, %v352, %v344
      %v394 = vsel %vm392, %v385, %v345
      %vm395 = vcmp.lt.f32.partialorder %v374, %v175
      %v396 = vsel %vm395, %v350, %v393
      %v397 = vsel %vm395, %v374, %v394
      %vm398 = vcmp.lt.f32.partialorder %v363, %v175
      %v399 = vsel %vm398, %v348, %v396
      %v400 = vsel %vm398, %v363, %v397
      %v401 = vsub.f32 %v399, %v391
      %v402 = vmul.f32 %v401, 0.25
      %v403 = vadd.f32 %v391, %v402
      %v404 = vmul.f32 %v401, 0.5
      %v405 = vadd.f32 %v391, %v404
      %v406 = vmul.f32 %v401, 0.75
      %v407 = vadd.f32 %v391, %v406
      %vm408 = vcmp.gt.f32.partialorder %v183, %v403
      %v409 = vsel %vm408, 1.0, 0.0
      %v410 = vsel %vm164, %v409, 0.0
      %v411 = vrot.slane %v410, 4
      %v412 = vadd.f32 %v410, %v411
      %v413 = vrot.slane %v412, 2
      %v414 = vadd.f32 %v412, %v413
      %v415 = vrot.slane %v414, 1
      %v416 = vadd.f32 %v414, %v415
      %417 = vadd.xlane.f32.xlu0 %v416
      %v418 = vpop.xlane.xlu0 %417
      %vm419 = vcmp.gt.f32.partialorder %v183, %v405
      %v420 = vsel %vm419, 1.0, 0.0
      %v421 = vsel %vm164, %v420, 0.0
      %v422 = vrot.slane %v421, 4
      %v423 = vadd.f32 %v421, %v422
      %v424 = vrot.slane %v423, 2
      %v425 = vadd.f32 %v423, %v424
      %v426 = vrot.slane %v425, 1
      %v427 = vadd.f32 %v425, %v426
      %428 = vadd.xlane.f32.xlu0 %v427
      %v429 = vpop.xlane.xlu0 %428
      %vm430 = vcmp.gt.f32.partialorder %v183, %v407
      %v431 = vsel %vm430, 1.0, 0.0
      %v432 = vsel %vm164, %v431, 0.0
      %v433 = vrot.slane %v432, 4
      %v434 = vadd.f32 %v432, %v433
      %v435 = vrot.slane %v434, 2
      %v436 = vadd.f32 %v434, %v435
      %v437 = vrot.slane %v436, 1
      %v438 = vadd.f32 %v436, %v437
      %439 = vadd.xlane.f32.xlu0 %v438
      %v440 = vpop.xlane.xlu0 %439
      %vm441 = vcmp.ge.f32.partialorder %v418, %v175
      %v442 = vsel %vm441, %v403, %v391
      %vm443 = vcmp.ge.f32.partialorder %v429, %v175
      %v444 = vsel %vm443, %v405, %v442
      %vm445 = vcmp.ge.f32.partialorder %v440, %v175
      %v446 = vsel %vm445, %v407, %v444
      %vm447 = vcmp.lt.f32.partialorder %v440, %v175
      %v448 = vsel %vm447, %v407, %v399
      %v449 = vsel %vm447, %v440, %v400
      %vm450 = vcmp.lt.f32.partialorder %v429, %v175
      %v451 = vsel %vm450, %v405, %v448
      %v452 = vsel %vm450, %v429, %v449
      %vm453 = vcmp.lt.f32.partialorder %v418, %v175
      %v454 = vsel %vm453, %v403, %v451
      %v455 = vsel %vm453, %v418, %v452
      %v456 = vsub.f32 %v454, %v446
      %v457 = vmul.f32 %v456, 0.25
      %v458 = vadd.f32 %v446, %v457
      %v459 = vmul.f32 %v456, 0.5
      %v460 = vadd.f32 %v446, %v459
      %v461 = vmul.f32 %v456, 0.75
      %v462 = vadd.f32 %v446, %v461
      %vm463 = vcmp.gt.f32.partialorder %v183, %v458
      %v464 = vsel %vm463, 1.0, 0.0
      %v465 = vsel %vm164, %v464, 0.0
      %v466 = vrot.slane %v465, 4
      %v467 = vadd.f32 %v465, %v466
      %v468 = vrot.slane %v467, 2
      %v469 = vadd.f32 %v467, %v468
      %v470 = vrot.slane %v469, 1
      %v471 = vadd.f32 %v469, %v470
      %472 = vadd.xlane.f32.xlu0 %v471
      %v473 = vpop.xlane.xlu0 %472
      %vm474 = vcmp.gt.f32.partialorder %v183, %v460
      %v475 = vsel %vm474, 1.0, 0.0
      %v476 = vsel %vm164, %v475, 0.0
      %v477 = vrot.slane %v476, 4
      %v478 = vadd.f32 %v476, %v477
      %v479 = vrot.slane %v478, 2
      %v480 = vadd.f32 %v478, %v479
      %v481 = vrot.slane %v480, 1
      %v482 = vadd.f32 %v480, %v481
      %483 = vadd.xlane.f32.xlu0 %v482
      %v484 = vpop.xlane.xlu0 %483
      %vm485 = vcmp.gt.f32.partialorder %v183, %v462
      %v486 = vsel %vm485, 1.0, 0.0
      %v487 = vsel %vm164, %v486, 0.0
      %v488 = vrot.slane %v487, 4
      %v489 = vadd.f32 %v487, %v488
      %v490 = vrot.slane %v489, 2
      %v491 = vadd.f32 %v489, %v490
      %v492 = vrot.slane %v491, 1
      %v493 = vadd.f32 %v491, %v492
      %494 = vadd.xlane.f32.xlu0 %v493
      %v495 = vpop.xlane.xlu0 %494
      %vm496 = vcmp.ge.f32.partialorder %v473, %v175
      %v497 = vsel %vm496, %v458, %v446
      %vm498 = vcmp.ge.f32.partialorder %v484, %v175
      %v499 = vsel %vm498, %v460, %v497
      %vm500 = vcmp.ge.f32.partialorder %v495, %v175
      %v501 = vsel %vm500, %v462, %v499
      %vm502 = vcmp.lt.f32.partialorder %v495, %v175
      %v503 = vsel %vm502, %v462, %v454
      %v504 = vsel %vm502, %v495, %v455
      %vm505 = vcmp.lt.f32.partialorder %v484, %v175
      %v506 = vsel %vm505, %v460, %v503
      %v507 = vsel %vm505, %v484, %v504
      %vm508 = vcmp.lt.f32.partialorder %v473, %v175
      %v509 = vsel %vm508, %v458, %v506
      %v510 = vsel %vm508, %v473, %v507
      %v511 = vsub.f32 %v509, %v501
      %v512 = vmul.f32 %v511, 0.25
      %v513 = vadd.f32 %v501, %v512
      %v514 = vmul.f32 %v511, 0.5
      %v515 = vadd.f32 %v501, %v514
      %v516 = vmul.f32 %v511, 0.75
      %v517 = vadd.f32 %v501, %v516
      %vm518 = vcmp.gt.f32.partialorder %v183, %v513
      %v519 = vsel %vm518, 1.0, 0.0
      %v520 = vsel %vm164, %v519, 0.0
      %v521 = vrot.slane %v520, 4
      %v522 = vadd.f32 %v520, %v521
      %v523 = vrot.slane %v522, 2
      %v524 = vadd.f32 %v522, %v523
      %v525 = vrot.slane %v524, 1
      %v526 = vadd.f32 %v524, %v525
      %527 = vadd.xlane.f32.xlu0 %v526
      %v528 = vpop.xlane.xlu0 %527
      %vm529 = vcmp.gt.f32.partialorder %v183, %v515
      %v530 = vsel %vm529, 1.0, 0.0
      %v531 = vsel %vm164, %v530, 0.0
      %v532 = vrot.slane %v531, 4
      %v533 = vadd.f32 %v531, %v532
      %v534 = vrot.slane %v533, 2
      %v535 = vadd.f32 %v533, %v534
      %v536 = vrot.slane %v535, 1
      %v537 = vadd.f32 %v535, %v536
      %538 = vadd.xlane.f32.xlu0 %v537
      %v539 = vpop.xlane.xlu0 %538
      %vm540 = vcmp.gt.f32.partialorder %v183, %v517
      %v541 = vsel %vm540, 1.0, 0.0
      %v542 = vsel %vm164, %v541, 0.0
      %v543 = vrot.slane %v542, 4
      %v544 = vadd.f32 %v542, %v543
      %v545 = vrot.slane %v544, 2
      %v546 = vadd.f32 %v544, %v545
      %v547 = vrot.slane %v546, 1
      %v548 = vadd.f32 %v546, %v547
      %549 = vadd.xlane.f32.xlu0 %v548
      %v550 = vpop.xlane.xlu0 %549
      %vm551 = vcmp.ge.f32.partialorder %v528, %v175
      %v552 = vsel %vm551, %v513, %v501
      %vm553 = vcmp.ge.f32.partialorder %v539, %v175
      %v554 = vsel %vm553, %v515, %v552
      %vm555 = vcmp.ge.f32.partialorder %v550, %v175
      %v556 = vsel %vm555, %v517, %v554
      %vm557 = vcmp.lt.f32.partialorder %v550, %v175
      %v558 = vsel %vm557, %v517, %v509
      %v559 = vsel %vm557, %v550, %v510
      %vm560 = vcmp.lt.f32.partialorder %v539, %v175
      %v561 = vsel %vm560, %v515, %v558
      %v562 = vsel %vm560, %v539, %v559
      %vm563 = vcmp.lt.f32.partialorder %v528, %v175
      %v564 = vsel %vm563, %v513, %v561
      %v565 = vsel %vm563, %v528, %v562
      %v566 = vsub.f32 %v564, %v556
      %v567 = vmul.f32 %v566, 0.25
      %v568 = vadd.f32 %v556, %v567
      %v569 = vmul.f32 %v566, 0.5
      %v570 = vadd.f32 %v556, %v569
      %v571 = vmul.f32 %v566, 0.75
      %v572 = vadd.f32 %v556, %v571
      %vm573 = vcmp.gt.f32.partialorder %v183, %v568
      %v574 = vsel %vm573, 1.0, 0.0
      %v575 = vsel %vm164, %v574, 0.0
      %v576 = vrot.slane %v575, 4
      %v577 = vadd.f32 %v575, %v576
      %v578 = vrot.slane %v577, 2
      %v579 = vadd.f32 %v577, %v578
      %v580 = vrot.slane %v579, 1
      %v581 = vadd.f32 %v579, %v580
      %582 = vadd.xlane.f32.xlu0 %v581
      %v583 = vpop.xlane.xlu0 %582
      %vm584 = vcmp.gt.f32.partialorder %v183, %v570
      %v585 = vsel %vm584, 1.0, 0.0
      %v586 = vsel %vm164, %v585, 0.0
      %v587 = vrot.slane %v586, 4
      %v588 = vadd.f32 %v586, %v587
      %v589 = vrot.slane %v588, 2
      %v590 = vadd.f32 %v588, %v589
      %v591 = vrot.slane %v590, 1
      %v592 = vadd.f32 %v590, %v591
      %593 = vadd.xlane.f32.xlu0 %v592
      %v594 = vpop.xlane.xlu0 %593
      %vm595 = vcmp.gt.f32.partialorder %v183, %v572
      %v596 = vsel %vm595, 1.0, 0.0
      %v597 = vsel %vm164, %v596, 0.0
      %v598 = vrot.slane %v597, 4
      %v599 = vadd.f32 %v597, %v598
      %v600 = vrot.slane %v599, 2
      %v601 = vadd.f32 %v599, %v600
      %v602 = vrot.slane %v601, 1
      %v603 = vadd.f32 %v601, %v602
      %604 = vadd.xlane.f32.xlu0 %v603
      %v605 = vpop.xlane.xlu0 %604
      %vm606 = vcmp.ge.f32.partialorder %v583, %v175
      %v607 = vsel %vm606, %v568, %v556
      %vm608 = vcmp.ge.f32.partialorder %v594, %v175
      %v609 = vsel %vm608, %v570, %v607
      %vm610 = vcmp.ge.f32.partialorder %v605, %v175
      %v611 = vsel %vm610, %v572, %v609
      %vm612 = vcmp.lt.f32.partialorder %v605, %v175
      %v613 = vsel %vm612, %v572, %v564
      %v614 = vsel %vm612, %v605, %v565
      %vm615 = vcmp.lt.f32.partialorder %v594, %v175
      %v616 = vsel %vm615, %v570, %v613
      %v617 = vsel %vm615, %v594, %v614
      %vm618 = vcmp.lt.f32.partialorder %v583, %v175
      %v619 = vsel %vm618, %v568, %v616
      %v620 = vsel %vm618, %v583, %v617
      %v621 = vsub.f32 %v619, %v611
      %v622 = vmul.f32 %v621, 0.25
      %v623 = vadd.f32 %v611, %v622
      %v624 = vmul.f32 %v621, 0.5
      %v625 = vadd.f32 %v611, %v624
      %v626 = vmul.f32 %v621, 0.75
      %v627 = vadd.f32 %v611, %v626
      %vm628 = vcmp.gt.f32.partialorder %v183, %v623
      %v629 = vsel %vm628, 1.0, 0.0
      %v630 = vsel %vm164, %v629, 0.0
      %v631 = vrot.slane %v630, 4
      %v632 = vadd.f32 %v630, %v631
      %v633 = vrot.slane %v632, 2
      %v634 = vadd.f32 %v632, %v633
      %v635 = vrot.slane %v634, 1
      %v636 = vadd.f32 %v634, %v635
      %637 = vadd.xlane.f32.xlu0 %v636
      %v638 = vpop.xlane.xlu0 %637
      %vm639 = vcmp.gt.f32.partialorder %v183, %v625
      %v640 = vsel %vm639, 1.0, 0.0
      %v641 = vsel %vm164, %v640, 0.0
      %v642 = vrot.slane %v641, 4
      %v643 = vadd.f32 %v641, %v642
      %v644 = vrot.slane %v643, 2
      %v645 = vadd.f32 %v643, %v644
      %v646 = vrot.slane %v645, 1
      %v647 = vadd.f32 %v645, %v646
      %648 = vadd.xlane.f32.xlu0 %v647
      %v649 = vpop.xlane.xlu0 %648
      %vm650 = vcmp.gt.f32.partialorder %v183, %v627
      %v651 = vsel %vm650, 1.0, 0.0
      %v652 = vsel %vm164, %v651, 0.0
      %v653 = vrot.slane %v652, 4
      %v654 = vadd.f32 %v652, %v653
      %v655 = vrot.slane %v654, 2
      %v656 = vadd.f32 %v654, %v655
      %v657 = vrot.slane %v656, 1
      %v658 = vadd.f32 %v656, %v657
      %659 = vadd.xlane.f32.xlu0 %v658
      %v660 = vpop.xlane.xlu0 %659
      %vm661 = vcmp.ge.f32.partialorder %v638, %v175
      %v662 = vsel %vm661, %v623, %v611
      %vm663 = vcmp.ge.f32.partialorder %v649, %v175
      %v664 = vsel %vm663, %v625, %v662
      %vm665 = vcmp.ge.f32.partialorder %v660, %v175
      %v666 = vsel %vm665, %v627, %v664
      %vm667 = vcmp.lt.f32.partialorder %v660, %v175
      %v668 = vsel %vm667, %v627, %v619
      %v669 = vsel %vm667, %v660, %v620
      %vm670 = vcmp.lt.f32.partialorder %v649, %v175
      %v671 = vsel %vm670, %v625, %v668
      %v672 = vsel %vm670, %v649, %v669
      %vm673 = vcmp.lt.f32.partialorder %v638, %v175
      %v674 = vsel %vm673, %v623, %v671
      %v675 = vsel %vm673, %v638, %v672
      %v676 = vsub.f32 %v674, %v666
      %v677 = vmul.f32 %v676, 0.25
      %v678 = vadd.f32 %v666, %v677
      %v679 = vmul.f32 %v676, 0.5
      %v680 = vadd.f32 %v666, %v679
      %v681 = vmul.f32 %v676, 0.75
      %v682 = vadd.f32 %v666, %v681
      %vm683 = vcmp.gt.f32.partialorder %v183, %v678
      %v684 = vsel %vm683, 1.0, 0.0
      %v685 = vsel %vm164, %v684, 0.0
      %v686 = vrot.slane %v685, 4
      %v687 = vadd.f32 %v685, %v686
      %v688 = vrot.slane %v687, 2
      %v689 = vadd.f32 %v687, %v688
      %v690 = vrot.slane %v689, 1
      %v691 = vadd.f32 %v689, %v690
      %692 = vadd.xlane.f32.xlu0 %v691
      %v693 = vpop.xlane.xlu0 %692
      %vm694 = vcmp.gt.f32.partialorder %v183, %v680
      %v695 = vsel %vm694, 1.0, 0.0
      %v696 = vsel %vm164, %v695, 0.0
      %v697 = vrot.slane %v696, 4
      %v698 = vadd.f32 %v696, %v697
      %v699 = vrot.slane %v698, 2
      %v700 = vadd.f32 %v698, %v699
      %v701 = vrot.slane %v700, 1
      %v702 = vadd.f32 %v700, %v701
      %703 = vadd.xlane.f32.xlu0 %v702
      %v704 = vpop.xlane.xlu0 %703
      %vm705 = vcmp.gt.f32.partialorder %v183, %v682
      %v706 = vsel %vm705, 1.0, 0.0
      %v707 = vsel %vm164, %v706, 0.0
      %v708 = vrot.slane %v707, 4
      %v709 = vadd.f32 %v707, %v708
      %v710 = vrot.slane %v709, 2
      %v711 = vadd.f32 %v709, %v710
      %v712 = vrot.slane %v711, 1
      %v713 = vadd.f32 %v711, %v712
      %714 = vadd.xlane.f32.xlu0 %v713
      %v715 = vpop.xlane.xlu0 %714
      %vm716 = vcmp.ge.f32.partialorder %v693, %v175
      %v717 = vsel %vm716, %v678, %v666
      %vm718 = vcmp.ge.f32.partialorder %v704, %v175
      %v719 = vsel %vm718, %v680, %v717
      %vm720 = vcmp.ge.f32.partialorder %v715, %v175
      %v721 = vsel %vm720, %v682, %v719
      %vm722 = vcmp.lt.f32.partialorder %v715, %v175
      %v723 = vsel %vm722, %v682, %v674
      %v724 = vsel %vm722, %v715, %v675
      %vm725 = vcmp.lt.f32.partialorder %v704, %v175
      %v726 = vsel %vm725, %v680, %v723
      %v727 = vsel %vm725, %v704, %v724
      %vm728 = vcmp.lt.f32.partialorder %v693, %v175
      %v729 = vsel %vm728, %v678, %v726
      %v730 = vsel %vm728, %v693, %v727
      %v731 = vsub.f32 %v729, %v721
      %v732 = vmul.f32 %v731, 0.25
      %v733 = vadd.f32 %v721, %v732
      %v734 = vmul.f32 %v731, 0.5
      %v735 = vadd.f32 %v721, %v734
      %v736 = vmul.f32 %v731, 0.75
      %v737 = vadd.f32 %v721, %v736
      %vm738 = vcmp.gt.f32.partialorder %v183, %v733
      %v739 = vsel %vm738, 1.0, 0.0
      %v740 = vsel %vm164, %v739, 0.0
      %v741 = vrot.slane %v740, 4
      %v742 = vadd.f32 %v740, %v741
      %v743 = vrot.slane %v742, 2
      %v744 = vadd.f32 %v742, %v743
      %v745 = vrot.slane %v744, 1
      %v746 = vadd.f32 %v744, %v745
      %747 = vadd.xlane.f32.xlu0 %v746
      %v748 = vpop.xlane.xlu0 %747
      %vm749 = vcmp.gt.f32.partialorder %v183, %v735
      %v750 = vsel %vm749, 1.0, 0.0
      %v751 = vsel %vm164, %v750, 0.0
      %v752 = vrot.slane %v751, 4
      %v753 = vadd.f32 %v751, %v752
      %v754 = vrot.slane %v753, 2
      %v755 = vadd.f32 %v753, %v754
      %v756 = vrot.slane %v755, 1
      %v757 = vadd.f32 %v755, %v756
      %758 = vadd.xlane.f32.xlu0 %v757
      %v759 = vpop.xlane.xlu0 %758
      %vm760 = vcmp.gt.f32.partialorder %v183, %v737
      %v761 = vsel %vm760, 1.0, 0.0
      %v762 = vsel %vm164, %v761, 0.0
      %v763 = vrot.slane %v762, 4
      %v764 = vadd.f32 %v762, %v763
      %v765 = vrot.slane %v764, 2
      %v766 = vadd.f32 %v764, %v765
      %v767 = vrot.slane %v766, 1
      %v768 = vadd.f32 %v766, %v767
      %769 = vadd.xlane.f32.xlu0 %v768
      %v770 = vpop.xlane.xlu0 %769
      %vm771 = vcmp.ge.f32.partialorder %v748, %v175
      %v772 = vsel %vm771, %v733, %v721
      %vm773 = vcmp.ge.f32.partialorder %v759, %v175
      %v774 = vsel %vm773, %v735, %v772
      %vm775 = vcmp.ge.f32.partialorder %v770, %v175
      %v776 = vsel %vm775, %v737, %v774
      %vm777 = vcmp.lt.f32.partialorder %v770, %v175
      %v778 = vsel %vm777, %v737, %v729
      %v779 = vsel %vm777, %v770, %v730
      %vm780 = vcmp.lt.f32.partialorder %v759, %v175
      %v781 = vsel %vm780, %v735, %v778
      %v782 = vsel %vm780, %v759, %v779
      %vm783 = vcmp.lt.f32.partialorder %v748, %v175
      %v784 = vsel %vm783, %v733, %v781
      %v785 = vsel %vm783, %v748, %v782
      %v786 = vsub.f32 %v784, %v776
      %v787 = vmul.f32 %v786, 0.25
      %v788 = vadd.f32 %v776, %v787
      %v789 = vmul.f32 %v786, 0.5
      %v790 = vadd.f32 %v776, %v789
      %v791 = vmul.f32 %v786, 0.75
      %v792 = vadd.f32 %v776, %v791
      %vm793 = vcmp.gt.f32.partialorder %v183, %v788
      %v794 = vsel %vm793, 1.0, 0.0
      %v795 = vsel %vm164, %v794, 0.0
      %v796 = vrot.slane %v795, 4
      %v797 = vadd.f32 %v795, %v796
      %v798 = vrot.slane %v797, 2
      %v799 = vadd.f32 %v797, %v798
      %v800 = vrot.slane %v799, 1
      %v801 = vadd.f32 %v799, %v800
      %802 = vadd.xlane.f32.xlu0 %v801
      %v803 = vpop.xlane.xlu0 %802
      %vm804 = vcmp.gt.f32.partialorder %v183, %v790
      %v805 = vsel %vm804, 1.0, 0.0
      %v806 = vsel %vm164, %v805, 0.0
      %v807 = vrot.slane %v806, 4
      %v808 = vadd.f32 %v806, %v807
      %v809 = vrot.slane %v808, 2
      %v810 = vadd.f32 %v808, %v809
      %v811 = vrot.slane %v810, 1
      %v812 = vadd.f32 %v810, %v811
      %813 = vadd.xlane.f32.xlu0 %v812
      %v814 = vpop.xlane.xlu0 %813
      %vm815 = vcmp.gt.f32.partialorder %v183, %v792
      %v816 = vsel %vm815, 1.0, 0.0
      %v817 = vsel %vm164, %v816, 0.0
      %v818 = vrot.slane %v817, 4
      %v819 = vadd.f32 %v817, %v818
      %v820 = vrot.slane %v819, 2
      %v821 = vadd.f32 %v819, %v820
      %v822 = vrot.slane %v821, 1
      %v823 = vadd.f32 %v821, %v822
      %824 = vadd.xlane.f32.xlu0 %v823
      %v825 = vpop.xlane.xlu0 %824
      %vm826 = vcmp.ge.f32.partialorder %v803, %v175
      %v827 = vsel %vm826, %v788, %v776
      %vm828 = vcmp.ge.f32.partialorder %v814, %v175
      %v829 = vsel %vm828, %v790, %v827
      %vm830 = vcmp.ge.f32.partialorder %v825, %v175
      %v831 = vsel %vm830, %v792, %v829
      %vm832 = vcmp.lt.f32.partialorder %v825, %v175
      %v833 = vsel %vm832, %v792, %v784
      %v834 = vsel %vm832, %v825, %v785
      %vm835 = vcmp.lt.f32.partialorder %v814, %v175
      %v836 = vsel %vm835, %v790, %v833
      %v837 = vsel %vm835, %v814, %v834
      %vm838 = vcmp.lt.f32.partialorder %v803, %v175
      %v839 = vsel %vm838, %v788, %v836
      %v840 = vsel %vm838, %v803, %v837
      %v841 = vsub.f32 %v839, %v831
      %v842 = vmul.f32 %v841, 0.25
      %v843 = vadd.f32 %v831, %v842
      %v844 = vmul.f32 %v841, 0.5
      %v845 = vadd.f32 %v831, %v844
      %v846 = vmul.f32 %v841, 0.75
      %v847 = vadd.f32 %v831, %v846
      %vm848 = vcmp.gt.f32.partialorder %v183, %v843
      %v849 = vsel %vm848, 1.0, 0.0
      %v850 = vsel %vm164, %v849, 0.0
      %v851 = vrot.slane %v850, 4
      %v852 = vadd.f32 %v850, %v851
      %v853 = vrot.slane %v852, 2
      %v854 = vadd.f32 %v852, %v853
      %v855 = vrot.slane %v854, 1
      %v856 = vadd.f32 %v854, %v855
      %857 = vadd.xlane.f32.xlu0 %v856
      %v858 = vpop.xlane.xlu0 %857
      %vm859 = vcmp.gt.f32.partialorder %v183, %v845
      %v860 = vsel %vm859, 1.0, 0.0
      %v861 = vsel %vm164, %v860, 0.0
      %v862 = vrot.slane %v861, 4
      %v863 = vadd.f32 %v861, %v862
      %v864 = vrot.slane %v863, 2
      %v865 = vadd.f32 %v863, %v864
      %v866 = vrot.slane %v865, 1
      %v867 = vadd.f32 %v865, %v866
      %868 = vadd.xlane.f32.xlu0 %v867
      %v869 = vpop.xlane.xlu0 %868
      %vm870 = vcmp.gt.f32.partialorder %v183, %v847
      %v871 = vsel %vm870, 1.0, 0.0
      %v872 = vsel %vm164, %v871, 0.0
      %v873 = vrot.slane %v872, 4
      %v874 = vadd.f32 %v872, %v873
      %v875 = vrot.slane %v874, 2
      %v876 = vadd.f32 %v874, %v875
      %v877 = vrot.slane %v876, 1
      %v878 = vadd.f32 %v876, %v877
      %879 = vadd.xlane.f32.xlu0 %v878
      %v880 = vpop.xlane.xlu0 %879
      %vm881 = vcmp.ge.f32.partialorder %v858, %v175
      %v882 = vsel %vm881, %v843, %v831
      %vm883 = vcmp.ge.f32.partialorder %v869, %v175
      %v884 = vsel %vm883, %v845, %v882
      %vm885 = vcmp.ge.f32.partialorder %v880, %v175
      %v886 = vsel %vm885, %v847, %v884
      %vm887 = vcmp.lt.f32.partialorder %v880, %v175
      %v888 = vsel %vm887, %v847, %v839
      %v889 = vsel %vm887, %v880, %v840
      %vm890 = vcmp.lt.f32.partialorder %v869, %v175
      %v891 = vsel %vm890, %v845, %v888
      %v892 = vsel %vm890, %v869, %v889
      %vm893 = vcmp.lt.f32.partialorder %v858, %v175
      %v894 = vsel %vm893, %v843, %v891
      %v895 = vsel %vm893, %v858, %v892
      %v896 = vsub.f32 %v894, %v886
      %v897 = vmul.f32 %v896, 0.25
      %v898 = vadd.f32 %v886, %v897
      %v899 = vmul.f32 %v896, 0.5
      %v900 = vadd.f32 %v886, %v899
      %v901 = vmul.f32 %v896, 0.75
      %v902 = vadd.f32 %v886, %v901
      %vm903 = vcmp.gt.f32.partialorder %v183, %v898
      %v904 = vsel %vm903, 1.0, 0.0
      %v905 = vsel %vm164, %v904, 0.0
      %v906 = vrot.slane %v905, 4
      %v907 = vadd.f32 %v905, %v906
      %v908 = vrot.slane %v907, 2
      %v909 = vadd.f32 %v907, %v908
      %v910 = vrot.slane %v909, 1
      %v911 = vadd.f32 %v909, %v910
      %912 = vadd.xlane.f32.xlu0 %v911
      %v913 = vpop.xlane.xlu0 %912
      %vm914 = vcmp.gt.f32.partialorder %v183, %v900
      %v915 = vsel %vm914, 1.0, 0.0
      %v916 = vsel %vm164, %v915, 0.0
      %v917 = vrot.slane %v916, 4
      %v918 = vadd.f32 %v916, %v917
      %v919 = vrot.slane %v918, 2
      %v920 = vadd.f32 %v918, %v919
      %v921 = vrot.slane %v920, 1
      %v922 = vadd.f32 %v920, %v921
      %923 = vadd.xlane.f32.xlu0 %v922
      %v924 = vpop.xlane.xlu0 %923
      %vm925 = vcmp.gt.f32.partialorder %v183, %v902
      %v926 = vsel %vm925, 1.0, 0.0
      %v927 = vsel %vm164, %v926, 0.0
      %v928 = vrot.slane %v927, 4
      %v929 = vadd.f32 %v927, %v928
      %v930 = vrot.slane %v929, 2
      %v931 = vadd.f32 %v929, %v930
      %v932 = vrot.slane %v931, 1
      %v933 = vadd.f32 %v931, %v932
      %934 = vadd.xlane.f32.xlu0 %v933
      %v935 = vpop.xlane.xlu0 %934
      %vm936 = vcmp.ge.f32.partialorder %v913, %v175
      %v937 = vsel %vm936, %v898, %v886
      %vm938 = vcmp.ge.f32.partialorder %v924, %v175
      %v939 = vsel %vm938, %v900, %v937
      %vm940 = vcmp.ge.f32.partialorder %v935, %v175
      %v941 = vsel %vm940, %v902, %v939
      %vm942 = vcmp.lt.f32.partialorder %v935, %v175
      %v943 = vsel %vm942, %v902, %v894
      %v944 = vsel %vm942, %v935, %v895
      %vm945 = vcmp.lt.f32.partialorder %v924, %v175
      %v946 = vsel %vm945, %v900, %v943
      %v947 = vsel %vm945, %v924, %v944
      %vm948 = vcmp.lt.f32.partialorder %v913, %v175
      %v949 = vsel %vm948, %v898, %v946
      %v950 = vsel %vm948, %v913, %v947
      %v951 = vsub.f32 %v949, %v941
      %v952 = vmul.f32 %v951, 0.25
      %v953 = vadd.f32 %v941, %v952
      %v954 = vmul.f32 %v951, 0.5
      %v955 = vadd.f32 %v941, %v954
      %v956 = vmul.f32 %v951, 0.75
      %v957 = vadd.f32 %v941, %v956
      %vm958 = vcmp.gt.f32.partialorder %v183, %v953
      %v959 = vsel %vm958, 1.0, 0.0
      %v960 = vsel %vm164, %v959, 0.0
      %v961 = vrot.slane %v960, 4
      %v962 = vadd.f32 %v960, %v961
      %v963 = vrot.slane %v962, 2
      %v964 = vadd.f32 %v962, %v963
      %v965 = vrot.slane %v964, 1
      %v966 = vadd.f32 %v964, %v965
      %967 = vadd.xlane.f32.xlu0 %v966
      %v968 = vpop.xlane.xlu0 %967
      %vm969 = vcmp.gt.f32.partialorder %v183, %v955
      %v970 = vsel %vm969, 1.0, 0.0
      %v971 = vsel %vm164, %v970, 0.0
      %v972 = vrot.slane %v971, 4
      %v973 = vadd.f32 %v971, %v972
      %v974 = vrot.slane %v973, 2
      %v975 = vadd.f32 %v973, %v974
      %v976 = vrot.slane %v975, 1
      %v977 = vadd.f32 %v975, %v976
      %978 = vadd.xlane.f32.xlu0 %v977
      %v979 = vpop.xlane.xlu0 %978
      %vm980 = vcmp.gt.f32.partialorder %v183, %v957
      %v981 = vsel %vm980, 1.0, 0.0
      %v982 = vsel %vm164, %v981, 0.0
      %v983 = vrot.slane %v982, 4
      %v984 = vadd.f32 %v982, %v983
      %v985 = vrot.slane %v984, 2
      %v986 = vadd.f32 %v984, %v985
      %v987 = vrot.slane %v986, 1
      %v988 = vadd.f32 %v986, %v987
      %989 = vadd.xlane.f32.xlu0 %v988
      %v990 = vpop.xlane.xlu0 %989
      %vm991 = vcmp.ge.f32.partialorder %v968, %v175
      %v992 = vsel %vm991, %v953, %v941
      %vm993 = vcmp.ge.f32.partialorder %v979, %v175
      %v994 = vsel %vm993, %v955, %v992
      %vm995 = vcmp.ge.f32.partialorder %v990, %v175
      %v996 = vsel %vm995, %v957, %v994
      %vm997 = vcmp.lt.f32.partialorder %v990, %v175
      %v998 = vsel %vm997, %v957, %v949
      %v999 = vsel %vm997, %v990, %v950
      %vm1000 = vcmp.lt.f32.partialorder %v979, %v175
      %v1001 = vsel %vm1000, %v955, %v998
      %v1002 = vsel %vm1000, %v979, %v999
      %vm1003 = vcmp.lt.f32.partialorder %v968, %v175
      %v1004 = vsel %vm1003, %v953, %v1001
      %v1005 = vsel %vm1003, %v968, %v1002
      %v1006 = vsub.f32 %v1004, %v996
      %v1007 = vmul.f32 %v1006, 0.25
      %v1008 = vadd.f32 %v996, %v1007
      %v1009 = vmul.f32 %v1006, 0.5
      %v1010 = vadd.f32 %v996, %v1009
      %v1011 = vmul.f32 %v1006, 0.75
      %v1012 = vadd.f32 %v996, %v1011
      %vm1013 = vcmp.gt.f32.partialorder %v183, %v1008
      %v1014 = vsel %vm1013, 1.0, 0.0
      %v1015 = vsel %vm164, %v1014, 0.0
      %v1016 = vrot.slane %v1015, 4
      %v1017 = vadd.f32 %v1015, %v1016
      %v1018 = vrot.slane %v1017, 2
      %v1019 = vadd.f32 %v1017, %v1018
      %v1020 = vrot.slane %v1019, 1
      %v1021 = vadd.f32 %v1019, %v1020
      %1022 = vadd.xlane.f32.xlu0 %v1021
      %v1023 = vpop.xlane.xlu0 %1022
      %vm1024 = vcmp.gt.f32.partialorder %v183, %v1010
      %v1025 = vsel %vm1024, 1.0, 0.0
      %v1026 = vsel %vm164, %v1025, 0.0
      %v1027 = vrot.slane %v1026, 4
      %v1028 = vadd.f32 %v1026, %v1027
      %v1029 = vrot.slane %v1028, 2
      %v1030 = vadd.f32 %v1028, %v1029
      %v1031 = vrot.slane %v1030, 1
      %v1032 = vadd.f32 %v1030, %v1031
      %1033 = vadd.xlane.f32.xlu0 %v1032
      %v1034 = vpop.xlane.xlu0 %1033
      %vm1035 = vcmp.gt.f32.partialorder %v183, %v1012
      %v1036 = vsel %vm1035, 1.0, 0.0
      %v1037 = vsel %vm164, %v1036, 0.0
      %v1038 = vrot.slane %v1037, 4
      %v1039 = vadd.f32 %v1037, %v1038
      %v1040 = vrot.slane %v1039, 2
      %v1041 = vadd.f32 %v1039, %v1040
      %v1042 = vrot.slane %v1041, 1
      %v1043 = vadd.f32 %v1041, %v1042
      %1044 = vadd.xlane.f32.xlu0 %v1043
      %v1045 = vpop.xlane.xlu0 %1044
      %vm1046 = vcmp.ge.f32.partialorder %v1023, %v175
      %v1047 = vsel %vm1046, %v1008, %v996
      %vm1048 = vcmp.ge.f32.partialorder %v1034, %v175
      %v1049 = vsel %vm1048, %v1010, %v1047
      %vm1050 = vcmp.ge.f32.partialorder %v1045, %v175
      %v1051 = vsel %vm1050, %v1012, %v1049
      %vm1052 = vcmp.lt.f32.partialorder %v1045, %v175
      %v1053 = vsel %vm1052, %v1012, %v1004
      %v1054 = vsel %vm1052, %v1045, %v1005
      %vm1055 = vcmp.lt.f32.partialorder %v1034, %v175
      %v1056 = vsel %vm1055, %v1010, %v1053
      %v1057 = vsel %vm1055, %v1034, %v1054
      %vm1058 = vcmp.lt.f32.partialorder %v1023, %v175
      %v1059 = vsel %vm1058, %v1008, %v1056
      %v1060 = vsel %vm1058, %v1023, %v1057
      %v1061 = vsub.f32 %v1059, %v1051
      %v1062 = vmul.f32 %v1061, 0.25
      %v1063 = vadd.f32 %v1051, %v1062
      %v1064 = vmul.f32 %v1061, 0.5
      %v1065 = vadd.f32 %v1051, %v1064
      %v1066 = vmul.f32 %v1061, 0.75
      %v1067 = vadd.f32 %v1051, %v1066
      %vm1068 = vcmp.gt.f32.partialorder %v183, %v1063
      %v1069 = vsel %vm1068, 1.0, 0.0
      %v1070 = vsel %vm164, %v1069, 0.0
      %v1071 = vrot.slane %v1070, 4
      %v1072 = vadd.f32 %v1070, %v1071
      %v1073 = vrot.slane %v1072, 2
      %v1074 = vadd.f32 %v1072, %v1073
      %v1075 = vrot.slane %v1074, 1
      %v1076 = vadd.f32 %v1074, %v1075
      %1077 = vadd.xlane.f32.xlu0 %v1076
      %v1078 = vpop.xlane.xlu0 %1077
      %vm1079 = vcmp.gt.f32.partialorder %v183, %v1065
      %v1080 = vsel %vm1079, 1.0, 0.0
      %v1081 = vsel %vm164, %v1080, 0.0
      %v1082 = vrot.slane %v1081, 4
      %v1083 = vadd.f32 %v1081, %v1082
      %v1084 = vrot.slane %v1083, 2
      %v1085 = vadd.f32 %v1083, %v1084
      %v1086 = vrot.slane %v1085, 1
      %v1087 = vadd.f32 %v1085, %v1086
      %1088 = vadd.xlane.f32.xlu0 %v1087
      %v1089 = vpop.xlane.xlu0 %1088
      %vm1090 = vcmp.gt.f32.partialorder %v183, %v1067
      %v1091 = vsel %vm1090, 1.0, 0.0
      %v1092 = vsel %vm164, %v1091, 0.0
      %v1093 = vrot.slane %v1092, 4
      %v1094 = vadd.f32 %v1092, %v1093
      %v1095 = vrot.slane %v1094, 2
      %v1096 = vadd.f32 %v1094, %v1095
      %v1097 = vrot.slane %v1096, 1
      %v1098 = vadd.f32 %v1096, %v1097
      %1099 = vadd.xlane.f32.xlu0 %v1098
      %v1100 = vpop.xlane.xlu0 %1099
      %vm1101 = vcmp.lt.f32.partialorder %v1100, %v175
      %v1102 = vsel %vm1101, %v1067, %v1059
      %v1103 = vsel %vm1101, %v1100, %v1060
      %vm1104 = vcmp.lt.f32.partialorder %v1089, %v175
      %v1105 = vsel %vm1104, %v1065, %v1102
      %v1106 = vsel %vm1104, %v1089, %v1103
      %vm1107 = vcmp.lt.f32.partialorder %v1078, %v175
      %v1108 = vsel %vm1107, %v1063, %v1105
      %v1109 = vsel %vm1107, %v1078, %v1106
      %vm1110 = vcmp.gt.f32.partialorder %v183, %v1108
      %v1111 = vsel %vm1110, %v182, 0.0
      %v1112 = vsel %vm164, %v1111, 0.0
      %v1113 = vrot.slane %v1112, 4
      %v1114 = vadd.f32 %v1112, %v1113
      %v1115 = vrot.slane %v1114, 2
      %v1116 = vadd.f32 %v1114, %v1115
      %v1117 = vrot.slane %v1116, 1
      %v1118 = vadd.f32 %v1116, %v1117
      %1119 = vadd.xlane.f32.xlu0 %v1118
      %v1120 = vpop.xlane.xlu0 %1119
      %vm1121 = vcmp.gt.f32.partialorder %v175, 0.0
      %v1122 = vsub.f32 %v175, %v1109
      %vm1123 = vcmp.lt.f32.partialorder %v1108, 1.0
      %v1124 = vmul.f32 %v1108, 0.5
      %v1125 = vmul.f32 %v1124, %v1108
      %v1126 = vsub.f32 %v1108, 0.5
      %v1127 = vsel %vm1123, %v1125, %v1126
      %v1128 = vmul.f32 %v1122, %v1127
      %v1129 = vadd.f32 %v1120, %v1128
      %v1130 = vsel %vm1121, %v1129, 0.0
      %v1131 = vlaneseq
      %v1132 = vand.u32 %v1131, 127
      %vm1133 = vcmp.eq.s32.totalorder %v1132, 0
      %v1134 = vsel %vm1133, %v193, 0.0
      %vm1135 = vcmp.eq.s32.totalorder %v1132, 1
      %v1136 = vsel %vm1135, %v173, 0.0
      %v1137 = vadd.f32 %v1134, %v1136
      %vm1138 = vcmp.eq.s32.totalorder %v1132, 2
      %v1139 = vsel %vm1138, %v1130, 0.0
      %v1140 = vadd.f32 %v1137, %v1139
      %vm1141 = vcmp.eq.s32.totalorder %v1132, 3
      %v1142 = vsel %vm1141, %v175, 0.0
      %v1143 = vadd.f32 %v1140, %v1142
      %vm1144 = vcmp.eq.s32.totalorder %v1132, 4
      %v1145 = vsel %vm1144, %v226, 0.0
      %v1146 = vadd.f32 %v1143, %v1145
      %1147 = vst [vmem:[%s159] sm:$0x1] %v1146
      %p1148 = scmp.lt.s32.totalorder %s13, 1
      %s1149 = scalar_select %p1148, %s13, 1
      %s1150 = scalar_lea.vmem %s2, %s1149
      // Predicated region
      $region29: #{centre_line_loss.1} parent=27 // pred_check
        %p1151 = pneg %p83
      $region30: #{centre_line_loss.1} parent=27 // pred_check_branch
        %1153 = sbr.rel (%p1151) target = $region32
      $region31: #{centre_line_loss.1} parent=27 // pred_region
        _
      $region32: #{centre_line_loss.1} parent=27 // pred_fallthru
        _
    $region28: #{centre_line_loss.1} parent=5 // pred_fallthru
      _
    %p1154 = scmp.le.s32.totalorder 2, %s8
    // Predicated region
    $region33: #{centre_line_loss.1} parent=5 // pred_check
      %p1155 = pneg %p1154
    $region34: #{centre_line_loss.1} parent=5 // pred_check_branch
      %1157 = sbr.rel (%p1155) target = $region36
    $region35: #{centre_line_loss.1} parent=5 // pred_region
      %s1158 = ssub.s32 %s8, 2
      // Predicated region
      $region37: #{centre_line_loss.1} parent=35 // pred_check
        %p1159 = pneg %p89
      $region38: #{centre_line_loss.1} parent=35 // pred_check_branch
        %1161 = sbr.rel (%p1159) target = $region40
      $region39: #{centre_line_loss.1} parent=35 // pred_region
        %p1162 = scmp.lt.s32.totalorder %s14, 1
        %s1163 = scalar_select %p1162, %s14, 1
        %s1164 = scalar_lea.vmem %s2, %s1163
      $region40: #{centre_line_loss.1} parent=35 // pred_fallthru
        _
    $region36: #{centre_line_loss.1} parent=5 // pred_fallthru
      _
  $region6: #{centre_line_loss.1} parent=0 // loop_footer
    %s12 = sadd.s32 1, %s8
  $region7: #{centre_line_loss.1} parent=0 // loop_footer_branch
    %7 = sbr.rel target = $region3
  $region8: #{centre_line_loss.1} parent=0 // loop_exit
    _

</llo_original>
